<compile_context>
chip_gen: v7x
topology: tpu7x:2x2x1
jax: 0.10.0
libtpu: 0.0.40
codegen_flags: <defaults>
</compile_context>

<pallas_src>
import functools

import jax
import jax.numpy as jnp
from jax.experimental import pallas as pl
from jax.experimental.pallas import tpu as pltpu


# ---------------------------------------------------------------------------
# Kernel
# ---------------------------------------------------------------------------
def _attend_kernel(a_ref, b_ref, w1_ref, b1_ref, w2_ref, b2_ref,
                   beta_ref, alpha_ref, *, compute_dtype, approx_recip):
    cdt = compute_dtype
    bb, ta, din = a_ref.shape
    _, tb, _ = b_ref.shape
    hp = w1_ref.shape[1]

    # Parameters: read once per grid step.  Biases stay f32 (added to the f32
    # accumulator); weights feed the MXU in the compute dtype.
    w1 = w1_ref[...].astype(cdt)              # (Din, Hp)
    w2 = w2_ref[...].astype(cdt)              # (Hp, Hp)
    b1 = b1_ref[...].astype(jnp.float32)      # (1, Hp)
    b2 = b2_ref[...].astype(jnp.float32)      # (1, Hp)

    xa = a_ref[...].astype(cdt)               # (BB, Ta, Din)
    xb = b_ref[...].astype(cdt)               # (BB, Tb, Din)

    # One MLP run over the concatenated A/B rows: a single long-M matmul per
    # weight load (halves MXU weight pushes vs. two separate calls).  The
    # flatten is a free re-view when Ta/Tb are sublane (8) aligned.
    m_a = bb * ta
    x_all = jnp.concatenate(
        [xa.reshape(m_a, din), xb.reshape(bb * tb, din)], axis=0)
    h = jnp.dot(x_all, w1, preferred_element_type=jnp.float32) + b1
    h = jnp.maximum(h, 0.0).astype(cdt)
    h = jnp.dot(h, w2, preferred_element_type=jnp.float32) + b2
    f_all = jnp.maximum(h, 0.0).astype(cdt)   # (BB*(Ta+Tb), Hp)
    f_a = f_all[:m_a].reshape(bb, ta, hp)     # (BB, Ta, Hp)
    f_b = f_all[m_a:].reshape(bb, tb, hp)     # (BB, Tb, Hp)

    def softmax_rows(x):                      # softmax over last axis, f32
        m = jnp.max(x, axis=-1, keepdims=True)
        p = jnp.exp(x - m)
        s = jnp.sum(p, axis=-1, keepdims=True)
        return p * pl.reciprocal(s, approx=approx_recip)

    # e[b,q,k] = <f_A[b,q], f_B[b,k]> ; contract last dims, no transpose.
    e = jnp.einsum('bqh,bkh->bqk', f_a, f_b,
                   preferred_element_type=jnp.float32)        # (BB, Ta, Tb)
    # e^T produced directly by a second MXU contraction (keeps both softmaxes
    # on the lane axis; the MXU has slack at these shapes).
    e_t = jnp.einsum('bkh,bqh->bkq', f_b, f_a,
                     preferred_element_type=jnp.float32)      # (BB, Tb, Ta)

    # beta = softmax(e, -1) @ B
    p_ab = softmax_rows(e).astype(cdt)                        # (BB, Ta, Tb)
    beta = jnp.einsum('bqk,bkd->bqd', p_ab, xb,
                      preferred_element_type=jnp.float32)     # (BB, Ta, Din)

    # alpha = softmax(e^T, -1) @ A
    p_ba = softmax_rows(e_t).astype(cdt)                      # (BB, Tb, Ta)
    alpha = jnp.einsum('bkq,bqd->bkd', p_ba, xa,
                       preferred_element_type=jnp.float32)    # (BB, Tb, Din)

    beta_ref[...] = beta.astype(beta_ref.dtype)
    alpha_ref[...] = alpha.astype(alpha_ref.dtype)


# ---------------------------------------------------------------------------
# Wrapper helpers
# ---------------------------------------------------------------------------
def _round_up(x, m):
    return (x + m - 1) // m * m


def _vmem_capacity_bytes():
    try:
        info = pltpu.get_tpu_info()
        cap = int(getattr(info, "vmem_capacity_bytes", 0))
        if cap > 0:
            return cap
    except Exception:
        pass
    try:
        kind = jax.devices()[0].device_kind.lower()
        if "v7" in kind:
            return 64 * 1024 * 1024
    except Exception:
        pass
    return 128 * 1024 * 1024


def _tensorcores_per_chip():
    try:
        kind = jax.devices()[0].device_kind.lower()
        if "v7" in kind:
            return 2
    except Exception:
        pass
    return 1


def _vmem_estimate(bb, ta, tb, din, hp, in_itm, out_itm, cdt_itm, w_itm):
    """Approximate per-step VMEM footprint, using in-VMEM (8,128) layouts."""
    dl = _round_up(din, 128)          # lane-padded feature dim
    hl = _round_up(hp, 128)           # lane-padded hidden dim
    ta8, tb8 = _round_up(ta, 8), _round_up(tb, 8)
    ta_l, tb_l = _round_up(ta, 128), _round_up(tb, 128)
    rows = bb * (ta8 + tb8)

    # double-buffered input + output blocks
    io = 2 * bb * (ta8 + tb8) * dl * (in_itm + out_itm)
    # resident parameters (assume double-buffered allocation)
    weights = 2 * (_round_up(din, 8) * hl + _round_up(hp, 8) * hl
                   + 2 * 8 * hl) * w_itm
    # live intermediates
    inter = 0
    inter += rows * dl * cdt_itm * 2                      # xa/xb casts + concat
    inter += rows * hl * 4 * 2                            # f32 hidden (two layers)
    inter += rows * hl * cdt_itm * 2                      # cdt hidden / f_a, f_b
    inter += bb * (ta8 * tb_l + tb8 * ta_l) * 4 * 2       # e, e^T + exp temps
    inter += bb * (ta8 * tb_l + tb8 * ta_l) * cdt_itm     # probabilities (cdt)
    inter += rows * dl * 4                                # f32 beta/alpha
    return io + weights + inter


def _pick_block_b(batch, ta, tb, din, hp, in_itm, out_itm, cdt_itm, w_itm,
                  vmem_budget, min_steps, row_cap=1024):
    """Largest divisor-of-batch block that fits VMEM; >= min_steps steps."""
    feasible = []
    for d in range(1, batch + 1):
        if batch % d:
            continue
        est = _vmem_estimate(d, ta, tb, din, hp, in_itm, out_itm, cdt_itm,
                             w_itm)
        if est * 1.25 > vmem_budget:
            continue
        if d > 1 and d * max(ta, tb) > row_cap:
            continue
        feasible.append(d)
    if not feasible:
        return 1
    preferred = [d for d in feasible if batch // d >= min_steps]
    return max(preferred) if preferred else max(feasible)


# ---------------------------------------------------------------------------
# Public entry point
# ---------------------------------------------------------------------------
def attend(A, B, w1, b1, w2, b2, *, block_b=None, mxu_dtype=None,
           approx_softmax=None):
    """A: (batch, Ta, Din), B: (batch, Tb, Din). Returns (beta, alpha)."""
    batch, ta, din = A.shape
    _, tb, _ = B.shape
    h = w1.shape[1]
    out_dtype = A.dtype

    # bf16 MXU feeds when the inputs are bf16; exact f32 path otherwise.
    if mxu_dtype is None:
        mxu_dtype = jnp.bfloat16 if A.dtype == jnp.bfloat16 else jnp.float32
    if approx_softmax is None:
        approx_softmax = (jnp.dtype(mxu_dtype) == jnp.dtype(jnp.bfloat16))

    # Only the tiny parameters get padded (hidden dim -> multiple of 128 so
    # intermediates are lane-dense).  Zero padding is exact: padded weight
    # cols / bias entries are zero, so padded hidden units stay 0 after ReLU.
    hp = _round_up(h, 128)
    w1_p = jnp.zeros((din, hp), w1.dtype).at[:, :h].set(w1)
    b1_p = jnp.zeros((1, hp), w1.dtype).at[0, :h].set(b1.reshape(-1))
    w2_p = jnp.zeros((hp, hp), w2.dtype).at[:h, :h].set(w2)
    b2_p = jnp.zeros((1, hp), w2.dtype).at[0, :h].set(b2.reshape(-1))

    in_itm = jnp.dtype(A.dtype).itemsize
    out_itm = jnp.dtype(out_dtype).itemsize
    cdt_itm = jnp.dtype(mxu_dtype).itemsize
    w_itm = jnp.dtype(w1.dtype).itemsize

    # Per-generation budgets: ~78% of per-core VMEM, capped at 112 MiB
    # (=> ~50 MiB on v7x, ~100 MiB on v5e/v6e).  The >=2-step rule only
    # applies on dual-TensorCore chips (v7x); single-TC chips prefer one big
    # block (the grid is a serial loop there).
    vmem_budget = max(32 << 20, min(int(0.78 * _vmem_capacity_bytes()),
                                    112 << 20))
    min_steps = 2 if _tensorcores_per_chip() >= 2 else 1

    if block_b is not None:
        bb = max(1, min(batch, int(block_b)))
        while batch % bb:
            bb -= 1
    else:
        bb = _pick_block_b(batch, ta, tb, din, hp, in_itm, out_itm, cdt_itm,
                           w_itm, vmem_budget, min_steps)
    grid = (batch // bb,)

    # Advisory cost estimate so XLA schedules producers/consumers sensibly.
    mlp_flops = 2 * batch * (ta + tb) * (din * hp + hp * hp)
    score_flops = 2 * 2 * batch * ta * tb * hp            # e and e^T
    ctx_flops = 2 * 2 * batch * ta * tb * din             # beta and alpha
    cost = pl.CostEstimate(
        flops=mlp_flops + score_flops + ctx_flops,
        transcendentals=2 * batch * ta * tb,
        bytes_accessed=(A.size * in_itm + B.size * in_itm
                        + (w1_p.size + b1_p.size + w2_p.size + b2_p.size)
                        * w_itm
                        + (batch * ta * din + batch * tb * din) * out_itm))

    kernel = functools.partial(_attend_kernel,
                               compute_dtype=mxu_dtype,
                               approx_recip=approx_softmax)

    beta, alpha = pl.pallas_call(
        kernel,
        out_shape=(
            jax.ShapeDtypeStruct((batch, ta, din), out_dtype),   # beta
            jax.ShapeDtypeStruct((batch, tb, din), out_dtype),   # alpha
        ),
        grid_spec=pltpu.PrefetchScalarGridSpec(
            num_scalar_prefetch=0,
            grid=grid,
            in_specs=[
                pl.BlockSpec((bb, ta, din), lambda i: (i, 0, 0)),   # A
                pl.BlockSpec((bb, tb, din), lambda i: (i, 0, 0)),   # B
                pl.BlockSpec((din, hp), lambda i: (0, 0)),          # W1
                pl.BlockSpec((1, hp), lambda i: (0, 0)),            # b1
                pl.BlockSpec((hp, hp), lambda i: (0, 0)),           # W2
                pl.BlockSpec((1, hp), lambda i: (0, 0)),            # b2
            ],
            out_specs=(
                pl.BlockSpec((bb, ta, din), lambda i: (i, 0, 0)),
                pl.BlockSpec((bb, tb, din), lambda i: (i, 0, 0)),
            ),
        ),
        compiler_params=pltpu.CompilerParams(
            dimension_semantics=("parallel",),
            vmem_limit_bytes=int(vmem_budget),
        ),
        cost_estimate=cost,
    )(A, B, w1_p, b1_p, w2_p, b2_p)

    return beta, alpha


# ---------------------------------------------------------------------------
# Reference & self-test
# ---------------------------------------------------------------------------
def _reference(A, B, w1, b1, w2, b2):
    def mlp(x):
        hh = jnp.maximum(x @ w1 + b1, 0.0)
        return jnp.maximum(hh @ w2 + b2, 0.0)
    f_a = mlp(A)
    f_b = mlp(B)
    e = jnp.einsum("bij,bkj->bik", f_a, f_b)
    beta = jnp.einsum("bik,bkd->bid", jax.nn.softmax(e, axis=-1), B)
    alpha = jnp.einsum("bik,bkd->bid",
                       jax.nn.softmax(jnp.swapaxes(e, 1, 2), axis=-1), A)
    return beta, alpha


if __name__ == "__main__":
    key = jax.random.PRNGKey(0)
    batch, ta, tb = 4, 8, 8
    num_inputs, num_hiddens = 32, 32

    k1, k2, k3, k4, k5, k6 = jax.random.split(key, 6)
    A = jax.random.normal(k1, (batch, ta, num_inputs), dtype=jnp.float32)
    B = jax.random.normal(k2, (batch, tb, num_inputs), dtype=jnp.float32)
    # Deterministic synthetic parameters (shapes follow nn.Linear in mlp()).
    w1 = jax.random.normal(k3, (num_inputs, num_hiddens), jnp.float32) * 0.1
    b1 = jax.random.normal(k4, (num_hiddens,), jnp.float32) * 0.1
    w2 = jax.random.normal(k5, (num_hiddens, num_hiddens), jnp.float32) * 0.1
    b2 = jax.random.normal(k6, (num_hiddens,), jnp.float32) * 0.1

    # ---- precise f32 path (exact reciprocal, f32 MXU feeds) ----
    beta, alpha = attend(A, B, w1, b1, w2, b2)
    jax.block_until_ready((beta, alpha))
    beta_ref, alpha_ref = _reference(A, B, w1, b1, w2, b2)
    assert beta.shape == beta_ref.shape and alpha.shape == alpha_ref.shape
    assert jnp.allclose(beta, beta_ref, atol=1e-4, rtol=1e-4)
    assert jnp.allclose(alpha, alpha_ref, atol=1e-4, rtol=1e-4)

    # ---- fast bf16 path (bf16 MXU feeds, approx reciprocal, f32 accum) ----
    A16, B16 = A.astype(jnp.bfloat16), B.astype(jnp.bfloat16)
    w1_16, b1_16 = w1.astype(jnp.bfloat16), b1.astype(jnp.bfloat16)
    w2_16, b2_16 = w2.astype(jnp.bfloat16), b2.astype(jnp.bfloat16)
    beta16, alpha16 = attend(A16, B16, w1_16, b1_16, w2_16, b2_16)
    jax.block_until_ready((beta16, alpha16))
    beta_ref16, alpha_ref16 = _reference(
        A16.astype(jnp.float32), B16.astype(jnp.float32),
        w1_16.astype(jnp.float32), b1_16.astype(jnp.float32),
        w2_16.astype(jnp.float32), b2_16.astype(jnp.float32))
    assert jnp.allclose(beta16.astype(jnp.float32), beta_ref16,
                        atol=6e-2, rtol=6e-2)
    assert jnp.allclose(alpha16.astype(jnp.float32), alpha_ref16,
                        atol=6e-2, rtol=6e-2)

    print("KERNEL_OK")
</pallas_src>

<mosaic_0001>
module attributes {stable_mosaic.version = 11 : i64} {
  func.func @_attend_kernel(%arg0: i32, %arg1: memref<4x8x32xf32, #tpu.memory_space<vmem>>, %arg2: memref<4x8x32xf32, #tpu.memory_space<vmem>>, %arg3: memref<32x128xf32, #tpu.memory_space<vmem>>, %arg4: memref<1x128xf32, #tpu.memory_space<vmem>>, %arg5: memref<128x128xf32, #tpu.memory_space<vmem>>, %arg6: memref<1x128xf32, #tpu.memory_space<vmem>>, %arg7: memref<4x8x32xf32, #tpu.memory_space<vmem>>, %arg8: memref<4x8x32xf32, #tpu.memory_space<vmem>>) attributes {dimension_semantics = [#tpu.dimension_semantics<parallel>], iteration_bounds = array<i64: 1>, scalar_prefetch = 0 : i64, scratch_operands = 0 : i64, tpu.core_type = #tpu.core_type<tc>, window_params = [{transform_indices = @transform_0, window_bounds = array<i64: 4, 8, 32>}, {transform_indices = @transform_1, window_bounds = array<i64: 4, 8, 32>}, {pipeline_mode = #tpu.pipeline_mode<synchronous>, transform_indices = @transform_2, window_bounds = array<i64: 32, 128>}, {pipeline_mode = #tpu.pipeline_mode<synchronous>, transform_indices = @transform_3, window_bounds = array<i64: 1, 128>}, {pipeline_mode = #tpu.pipeline_mode<synchronous>, transform_indices = @transform_4, window_bounds = array<i64: 128, 128>}, {pipeline_mode = #tpu.pipeline_mode<synchronous>, transform_indices = @transform_5, window_bounds = array<i64: 1, 128>}, {transform_indices = @transform_6, window_bounds = array<i64: 4, 8, 32>}, {transform_indices = @transform_7, window_bounds = array<i64: 4, 8, 32>}]} {
    %c0 = arith.constant 0 : index
    %c0_0 = arith.constant 0 : index
    %0 = vector.load %arg3[%c0, %c0_0] : memref<32x128xf32, #tpu.memory_space<vmem>>, vector<32x128xf32>
    %c0_1 = arith.constant 0 : index
    %c0_2 = arith.constant 0 : index
    %1 = vector.load %arg5[%c0_1, %c0_2] : memref<128x128xf32, #tpu.memory_space<vmem>>, vector<128x128xf32>
    %c0_3 = arith.constant 0 : index
    %c0_4 = arith.constant 0 : index
    %2 = vector.load %arg4[%c0_3, %c0_4] : memref<1x128xf32, #tpu.memory_space<vmem>>, vector<1x128xf32>
    %c0_5 = arith.constant 0 : index
    %c0_6 = arith.constant 0 : index
    %3 = vector.load %arg6[%c0_5, %c0_6] : memref<1x128xf32, #tpu.memory_space<vmem>>, vector<1x128xf32>
    %c0_7 = arith.constant 0 : index
    %c0_8 = arith.constant 0 : index
    %c0_9 = arith.constant 0 : index
    %4 = vector.load %arg1[%c0_7, %c0_8, %c0_9] : memref<4x8x32xf32, #tpu.memory_space<vmem>>, vector<4x8x32xf32>
    %c0_10 = arith.constant 0 : index
    %c0_11 = arith.constant 0 : index
    %c0_12 = arith.constant 0 : index
    %5 = vector.load %arg2[%c0_10, %c0_11, %c0_12] : memref<4x8x32xf32, #tpu.memory_space<vmem>>, vector<4x8x32xf32>
    %6 = vector.shape_cast %4 : vector<4x8x32xf32> to vector<32x32xf32>
    %7 = vector.shape_cast %5 : vector<4x8x32xf32> to vector<32x32xf32>
    %8 = tpu.concatenate %6, %7 in 0 : vector<32x32xf32>, vector<32x32xf32> -> vector<64x32xf32>
    %cst = arith.constant dense<0.000000e+00> : vector<64x128xf32>
    %9 = tpu.matmul %8, %0, %cst {dimension_numbers = #tpu.dot_dimension_numbers<[1], [0], [0], [1], [0, 0, 1, 1], [], []>} : vector<64x32xf32>, vector<32x128xf32>, vector<64x128xf32> -> vector<64x128xf32>
    %10 = vector.broadcast %2 : vector<1x128xf32> to vector<64x128xf32>
    %11 = arith.addf %9, %10 : vector<64x128xf32>
    %cst_13 = arith.constant 0.000000e+00 : f32
    %12 = vector.broadcast %cst_13 : f32 to vector<64x128xf32>
    %13 = arith.maximumf %11, %12 : vector<64x128xf32>
    %cst_14 = arith.constant dense<0.000000e+00> : vector<64x128xf32>
    %14 = tpu.matmul %13, %1, %cst_14 {dimension_numbers = #tpu.dot_dimension_numbers<[1], [0], [0], [1], [0, 0, 1, 1], [], []>} : vector<64x128xf32>, vector<128x128xf32>, vector<64x128xf32> -> vector<64x128xf32>
    %15 = vector.broadcast %3 : vector<1x128xf32> to vector<64x128xf32>
    %16 = arith.addf %14, %15 : vector<64x128xf32>
    %cst_15 = arith.constant 0.000000e+00 : f32
    %17 = vector.broadcast %cst_15 : f32 to vector<64x128xf32>
    %18 = arith.maximumf %16, %17 : vector<64x128xf32>
    %19 = vector.extract_strided_slice %18 {offsets = [0, 0], sizes = [32, 128], strides = [1, 1]} : vector<64x128xf32> to vector<32x128xf32>
    %20 = vector.shape_cast %19 : vector<32x128xf32> to vector<4x8x128xf32>
    %21 = vector.extract_strided_slice %18 {offsets = [32, 0], sizes = [32, 128], strides = [1, 1]} : vector<64x128xf32> to vector<32x128xf32>
    %22 = vector.shape_cast %21 : vector<32x128xf32> to vector<4x8x128xf32>
    "tpu.trace_start"() <{level = 10 : i32, message = "bqh,bkh->bqk"}> : () -> ()
    %cst_16 = arith.constant dense<0.000000e+00> : vector<4x8x8xf32>
    %23 = tpu.matmul %20, %22, %cst_16 {dimension_numbers = #tpu.dot_dimension_numbers<[2], [2], [1], [1], [0, 0, 0, 1, 1, 1], [0], [0]>} : vector<4x8x128xf32>, vector<4x8x128xf32>, vector<4x8x8xf32> -> vector<4x8x8xf32>
    "tpu.trace_stop"() : () -> ()
    "tpu.trace_start"() <{level = 10 : i32, message = "bkh,bqh->bkq"}> : () -> ()
    %cst_17 = arith.constant dense<0.000000e+00> : vector<4x8x8xf32>
    %24 = tpu.matmul %22, %20, %cst_17 {dimension_numbers = #tpu.dot_dimension_numbers<[2], [2], [1], [1], [0, 0, 0, 1, 1, 1], [0], [0]>} : vector<4x8x128xf32>, vector<4x8x128xf32>, vector<4x8x8xf32> -> vector<4x8x8xf32>
    "tpu.trace_stop"() : () -> ()
    %cst_18 = arith.constant dense<0xFF800000> : vector<4x8xf32>
    %25 = vector.multi_reduction <maximumf>, %23, %cst_18 [2] : vector<4x8x8xf32> to vector<4x8xf32>
    %26 = vector.shape_cast %25 : vector<4x8xf32> to vector<4x8x1xf32>
    %27 = vector.broadcast %26 : vector<4x8x1xf32> to vector<4x8x8xf32>
    %28 = arith.subf %23, %27 : vector<4x8x8xf32>
    %29 = math.exp %28 : vector<4x8x8xf32>
    %cst_19 = arith.constant dense<0.000000e+00> : vector<4x8xf32>
    %30 = vector.multi_reduction <add>, %29, %cst_19 [2] : vector<4x8x8xf32> to vector<4x8xf32>
    %31 = vector.shape_cast %30 : vector<4x8xf32> to vector<4x8x1xf32>
    %32 = tpu.reciprocal %31 : vector<4x8x1xf32> -> vector<4x8x1xf32>
    %33 = vector.broadcast %32 : vector<4x8x1xf32> to vector<4x8x8xf32>
    %34 = arith.mulf %29, %33 : vector<4x8x8xf32>
    "tpu.trace_start"() <{level = 10 : i32, message = "bqk,bkd->bqd"}> : () -> ()
    %cst_20 = arith.constant dense<0.000000e+00> : vector<4x8x32xf32>
    %35 = tpu.matmul %34, %5, %cst_20 {dimension_numbers = #tpu.dot_dimension_numbers<[2], [1], [1], [2], [0, 0, 0, 1, 1, 2], [0], [0]>} : vector<4x8x8xf32>, vector<4x8x32xf32>, vector<4x8x32xf32> -> vector<4x8x32xf32>
    "tpu.trace_stop"() : () -> ()
    %cst_21 = arith.constant dense<0xFF800000> : vector<4x8xf32>
    %36 = vector.multi_reduction <maximumf>, %24, %cst_21 [2] : vector<4x8x8xf32> to vector<4x8xf32>
    %37 = vector.shape_cast %36 : vector<4x8xf32> to vector<4x8x1xf32>
    %38 = vector.broadcast %37 : vector<4x8x1xf32> to vector<4x8x8xf32>
    %39 = arith.subf %24, %38 : vector<4x8x8xf32>
    %40 = math.exp %39 : vector<4x8x8xf32>
    %cst_22 = arith.constant dense<0.000000e+00> : vector<4x8xf32>
    %41 = vector.multi_reduction <add>, %40, %cst_22 [2] : vector<4x8x8xf32> to vector<4x8xf32>
    %42 = vector.shape_cast %41 : vector<4x8xf32> to vector<4x8x1xf32>
    %43 = tpu.reciprocal %42 : vector<4x8x1xf32> -> vector<4x8x1xf32>
    %44 = vector.broadcast %43 : vector<4x8x1xf32> to vector<4x8x8xf32>
    %45 = arith.mulf %40, %44 : vector<4x8x8xf32>
    "tpu.trace_start"() <{level = 10 : i32, message = "bkq,bqd->bkd"}> : () -> ()
    %cst_23 = arith.constant dense<0.000000e+00> : vector<4x8x32xf32>
    %46 = tpu.matmul %45, %4, %cst_23 {dimension_numbers = #tpu.dot_dimension_numbers<[2], [1], [1], [2], [0, 0, 0, 1, 1, 2], [0], [0]>} : vector<4x8x8xf32>, vector<4x8x32xf32>, vector<4x8x32xf32> -> vector<4x8x32xf32>
    "tpu.trace_stop"() : () -> ()
    %c0_24 = arith.constant 0 : index
    %c0_25 = arith.constant 0 : index
    %c0_26 = arith.constant 0 : index
    %47 = vector.load %arg7[%c0_24, %c0_25, %c0_26] : memref<4x8x32xf32, #tpu.memory_space<vmem>>, vector<4x8x32xf32>
    tpu.vector_store %arg7[%c0_24, %c0_25, %c0_26], %35 {strides = array<i32>} : memref<4x8x32xf32, #tpu.memory_space<vmem>>, vector<4x8x32xf32>,
    %c0_27 = arith.constant 0 : index
    %c0_28 = arith.constant 0 : index
    %c0_29 = arith.constant 0 : index
    %48 = vector.load %arg8[%c0_27, %c0_28, %c0_29] : memref<4x8x32xf32, #tpu.memory_space<vmem>>, vector<4x8x32xf32>
    tpu.vector_store %arg8[%c0_27, %c0_28, %c0_29], %46 {strides = array<i32>} : memref<4x8x32xf32, #tpu.memory_space<vmem>>, vector<4x8x32xf32>,
    return
  }
  func.func @transform_0(%arg0: i32) -> (i32, i32, i32) {
    %c0_i32 = arith.constant 0 : i32
    %c0_i32_0 = arith.constant 0 : i32
    %c0_i32_1 = arith.constant 0 : i32
    return %arg0, %c0_i32, %c0_i32_0 : i32, i32, i32
  }
  func.func @transform_1(%arg0: i32) -> (i32, i32, i32) {
    %c0_i32 = arith.constant 0 : i32
    %c0_i32_0 = arith.constant 0 : i32
    %c0_i32_1 = arith.constant 0 : i32
    return %arg0, %c0_i32, %c0_i32_0 : i32, i32, i32
  }
  func.func @transform_2(%arg0: i32) -> (i32, i32) {
    %c0_i32 = arith.constant 0 : i32
    %c0_i32_0 = arith.constant 0 : i32
    %c0_i32_1 = arith.constant 0 : i32
    return %c0_i32, %c0_i32_0 : i32, i32
  }
  func.func @transform_3(%arg0: i32) -> (i32, i32) {
    %c0_i32 = arith.constant 0 : i32
    %c0_i32_0 = arith.constant 0 : i32
    %c0_i32_1 = arith.constant 0 : i32
    return %c0_i32, %c0_i32_0 : i32, i32
  }
  func.func @transform_4(%arg0: i32) -> (i32, i32) {
    %c0_i32 = arith.constant 0 : i32
    %c0_i32_0 = arith.constant 0 : i32
    %c0_i32_1 = arith.constant 0 : i32
    return %c0_i32, %c0_i32_0 : i32, i32
  }
  func.func @transform_5(%arg0: i32) -> (i32, i32) {
    %c0_i32 = arith.constant 0 : i32
    %c0_i32_0 = arith.constant 0 : i32
    %c0_i32_1 = arith.constant 0 : i32
    return %c0_i32, %c0_i32_0 : i32, i32
  }
  func.func @transform_6(%arg0: i32) -> (i32, i32, i32) {
    %c0_i32 = arith.constant 0 : i32
    %c0_i32_0 = arith.constant 0 : i32
    %c0_i32_1 = arith.constant 0 : i32
    return %arg0, %c0_i32, %c0_i32_0 : i32, i32, i32
  }
  func.func @transform_7(%arg0: i32) -> (i32, i32, i32) {
    %c0_i32 = arith.constant 0 : i32
    %c0_i32_0 = arith.constant 0 : i32
    %c0_i32_1 = arith.constant 0 : i32
    return %arg0, %c0_i32, %c0_i32_0 : i32, i32, i32
  }
}

</mosaic_0001>

<llo_original>
// kernel: tpu_custom_call.1
$region0: #{tpu_custom_call.1}
  #allocation0 [shape = 'u32[]', space=smem, size = 0x4, offset = 0x4, fixed_abs, tag = 'smem constant byte address 0x4 - core index']
  #allocation1 [shape = 'u32[144,128]{1,0:T(1,128)}', space=vmem, size = 0x12000, scoped, tag = 'internal scratch']
  %s0 = inlined_call_operand.hbm [shape: f32[4,8,32], index: 0, kind: input, shape index: {}]
  %s1 = inlined_call_operand.hbm [shape: f32[4,8,32], index: 1, kind: input, shape index: {}]
  %s2 = inlined_call_operand.hbm [shape: f32[32,128], index: 2, kind: input, shape index: {}]
  %s3 = inlined_call_operand.hbm [shape: f32[1,128], index: 3, kind: input, shape index: {}]
  %s4 = inlined_call_operand.hbm [shape: f32[128,128], index: 4, kind: input, shape index: {}]
  %s5 = inlined_call_operand.hbm [shape: f32[1,128], index: 5, kind: input, shape index: {}]
  %s6 = inlined_call_operand.hbm [shape: f32[4,8,32], index: 6, kind: output, shape index: {0}]
  %s7 = inlined_call_operand.hbm [shape: f32[4,8,32], index: 7, kind: output, shape index: {1}]
  %8 = xla_tuple %s6, %s7
  %s9 = sld [smem:[#allocation0]]
  $region66: #{tpu_custom_call.1} parent=0
    _
  %s11 = ssub.s32 1, %s9
  %s12 = scalar_select 0, %s11, %s9
  $region1: #{tpu_custom_call.1} parent=0
    #allocation2 [shape = 'u8[16384]{0}', space=vmem, size = 0x4000, scoped, tag = 'input window, operand 0, single buffered']
    #allocation3 [shape = 's32[1]{0}', space=sflag, size = 0x4, scoped, tag = 'scoped memory for tpu_custom_call.1']
    #allocation4 [shape = 's32[1]{0}', space=sflag, size = 0x4, scoped, tag = 'scoped memory for tpu_custom_call.1']
    #allocation5 [shape = 'u8[16384]{0}', space=vmem, size = 0x4000, scoped, tag = 'input window, operand 1, single buffered']
    #allocation6 [shape = 's32[1]{0}', space=sflag, size = 0x4, scoped, tag = 'scoped memory for tpu_custom_call.1']
    #allocation7 [shape = 'u8[16384]{0}', space=vmem, size = 0x4000, scoped, tag = 'input window, operand 2, single buffered']
    #allocation8 [shape = 'u8[512]{0}', space=vmem, size = 0x400, scoped, tag = 'input window, operand 3, single buffered']
    #allocation9 [shape = 's32[1]{0}', space=sflag, size = 0x4, scoped, tag = 'scoped memory for tpu_custom_call.1']
    #allocation10 [shape = 'u8[65536]{0}', space=vmem, size = 0x10000, scoped, tag = 'input window, operand 4, single buffered']
    #allocation11 [shape = 'u8[512]{0}', space=vmem, size = 0x400, scoped, tag = 'input window, operand 5, single buffered']
    #allocation12 [shape = 's32[1]{0}', space=sflag, size = 0x4, scoped, tag = 'scoped memory for tpu_custom_call.1']
    #allocation13 [shape = 'u8[16384]{0}', space=vmem, size = 0x4000, scoped, tag = 'output window, operand 0, single buffered']
    #allocation14 [shape = 'u8[16384]{0}', space=vmem, size = 0x4000, scoped, tag = 'output window, operand 1, single buffered']
    #allocation15 [shape = 's32[1]{0}', space=sflag, size = 0x4, scoped, tag = 'scoped memory for tpu_custom_call.1']
    %13 = vsyncpa [#allocation3], 0
    %14 = vsyncpa [#allocation6], 0
    %15 = vsyncpa [#allocation9], 0
    %16 = vsyncpa [#allocation12], 0
    %17 = vsyncpa [#allocation4], 0
    %18 = vsyncpa [#allocation15], 0
    // Predicated region
    $region2: #{tpu_custom_call.1} parent=1 // pred_check
      _
    $region3: #{tpu_custom_call.1} parent=1 // pred_check_branch
      %20 = sbr.rel (0) target = $region5
    $region4: #{tpu_custom_call.1} parent=1 // pred_region
      %s22 = ssub.s32 512, 512
      %23 = vsyncadd [#allocation3], %s22
      %s24 = sshll.u32 [#allocation2], 4
      %s25 = int_to_ptr.vmem [resolvable:$true] %s24
      %30 = dma.hbm_to_vmem [thread:$0]  %s0, 512, %s25, [#allocation3], 128, 128, 8
    $region5: #{tpu_custom_call.1} parent=1 // pred_fallthru
      _
    // Predicated region
    $region6: #{tpu_custom_call.1} parent=1 // pred_check
      _
    $region7: #{tpu_custom_call.1} parent=1 // pred_check_branch
      %32 = sbr.rel (0) target = $region9
    $region8: #{tpu_custom_call.1} parent=1 // pred_region
      %s34 = ssub.s32 512, 512
      %35 = vsyncadd [#allocation6], %s34
      %s36 = sshll.u32 [#allocation5], 4
      %s37 = int_to_ptr.vmem [resolvable:$true] %s36
      %42 = dma.hbm_to_vmem [thread:$0]  %s1, 512, %s37, [#allocation6], 128, 128, 8
    $region9: #{tpu_custom_call.1} parent=1 // pred_fallthru
      _
    // Predicated region
    $region10: #{tpu_custom_call.1} parent=1 // pred_check
      _
    $region11: #{tpu_custom_call.1} parent=1 // pred_check_branch
      %44 = sbr.rel (0) target = $region13
    $region12: #{tpu_custom_call.1} parent=1 // pred_region
      %s46 = ssub.s32 512, 512
      %47 = vsyncadd [#allocation6], %s46
      %s48 = sshll.u32 [#allocation7], 4
      %s49 = int_to_ptr.vmem [resolvable:$true] %s48
      %54 = dma.hbm_to_vmem [thread:$0]  %s2, 512, %s49, [#allocation6], 128, 128, 8
    $region13: #{tpu_custom_call.1} parent=1 // pred_fallthru
      _
    // Predicated region
    $region14: #{tpu_custom_call.1} parent=1 // pred_check
      _
    $region15: #{tpu_custom_call.1} parent=1 // pred_check_branch
      %56 = sbr.rel (0) target = $region17
    $region16: #{tpu_custom_call.1} parent=1 // pred_region
      %s58 = ssub.s32 16, 16
      %59 = vsyncadd [#allocation9], %s58
      %s61 = sshll.u32 [#allocation8], 4
      %s62 = int_to_ptr.vmem [resolvable:$true] %s61
      %64 = dma.hbm_to_vmem [thread:$0]  %s3, 16, %s62, [#allocation9]
    $region17: #{tpu_custom_call.1} parent=1 // pred_fallthru
      _
    // Predicated region
    $region18: #{tpu_custom_call.1} parent=1 // pred_check
      _
    $region19: #{tpu_custom_call.1} parent=1 // pred_check_branch
      %66 = sbr.rel (0) target = $region21
    $region20: #{tpu_custom_call.1} parent=1 // pred_region
      %s68 = ssub.s32 2048, 2048
      %69 = vsyncadd [#allocation9], %s68
      %s70 = sshll.u32 [#allocation10], 4
      %s71 = int_to_ptr.vmem [resolvable:$true] %s70
      %76 = dma.hbm_to_vmem [thread:$0]  %s4, 2048, %s71, [#allocation9], 128, 128, 8
    $region21: #{tpu_custom_call.1} parent=1 // pred_fallthru
      _
    // Predicated region
    $region22: #{tpu_custom_call.1} parent=1 // pred_check
      _
    $region23: #{tpu_custom_call.1} parent=1 // pred_check_branch
      %78 = sbr.rel (0) target = $region25
    $region24: #{tpu_custom_call.1} parent=1 // pred_region
      %s80 = ssub.s32 16, 16
      %81 = vsyncadd [#allocation12], %s80
      %s83 = sshll.u32 [#allocation11], 4
      %s84 = int_to_ptr.vmem [resolvable:$true] %s83
      %86 = dma.hbm_to_vmem [thread:$0]  %s5, 16, %s84, [#allocation12]
    $region25: #{tpu_custom_call.1} parent=1 // pred_fallthru
      _
    // Predicated region
    $region26: #{tpu_custom_call.1} parent=1 // pred_check
      _
    $region27: #{tpu_custom_call.1} parent=1 // pred_check_branch
      %88 = sbr.rel (0) target = $region29
    $region28: #{tpu_custom_call.1} parent=1 // pred_region
      %89 = dma.done [#allocation3], 512
    $region29: #{tpu_custom_call.1} parent=1 // pred_fallthru
      _
    // Predicated region
    $region30: #{tpu_custom_call.1} parent=1 // pred_check
      _
    $region31: #{tpu_custom_call.1} parent=1 // pred_check_branch
      %91 = sbr.rel (0) target = $region33
    $region32: #{tpu_custom_call.1} parent=1 // pred_region
      %92 = dma.done [#allocation6], 512
    $region33: #{tpu_custom_call.1} parent=1 // pred_fallthru
      _
    // Predicated region
    $region34: #{tpu_custom_call.1} parent=1 // pred_check
      _
    $region35: #{tpu_custom_call.1} parent=1 // pred_check_branch
      %94 = sbr.rel (0) target = $region37
    $region36: #{tpu_custom_call.1} parent=1 // pred_region
      %95 = dma.done [#allocation6], 512
    $region37: #{tpu_custom_call.1} parent=1 // pred_fallthru
      _
    // Predicated region
    $region38: #{tpu_custom_call.1} parent=1 // pred_check
      _
    $region39: #{tpu_custom_call.1} parent=1 // pred_check_branch
      %97 = sbr.rel (0) target = $region41
    $region40: #{tpu_custom_call.1} parent=1 // pred_region
      %98 = dma.done [#allocation9], 16
    $region41: #{tpu_custom_call.1} parent=1 // pred_fallthru
      _
    // Predicated region
    $region42: #{tpu_custom_call.1} parent=1 // pred_check
      _
    $region43: #{tpu_custom_call.1} parent=1 // pred_check_branch
      %100 = sbr.rel (0) target = $region45
    $region44: #{tpu_custom_call.1} parent=1 // pred_region
      %101 = dma.done [#allocation9], 2048
    $region45: #{tpu_custom_call.1} parent=1 // pred_fallthru
      _
    // Predicated region
    $region46: #{tpu_custom_call.1} parent=1 // pred_check
      _
    $region47: #{tpu_custom_call.1} parent=1 // pred_check_branch
      %103 = sbr.rel (0) target = $region49
    $region48: #{tpu_custom_call.1} parent=1 // pred_region
      %104 = dma.done [#allocation12], 16
    $region49: #{tpu_custom_call.1} parent=1 // pred_fallthru
      _
    %v105 = vld [vmem:[#allocation7] sm:$0xff]
    %v106 = vld [vmem:[#allocation7 + $0x8] sm:$0xff]
    %v107 = vld [vmem:[#allocation7 + $0x10] sm:$0xff]
    %v108 = vld [vmem:[#allocation7 + $0x18] sm:$0xff]
    %v109 = vld [vmem:[#allocation10] sm:$0xff]
    %v110 = vld [vmem:[#allocation10 + $0x8] sm:$0xff]
    %v111 = vld [vmem:[#allocation10 + $0x10] sm:$0xff]
    %v112 = vld [vmem:[#allocation10 + $0x18] sm:$0xff]
    %v113 = vld [vmem:[#allocation10 + $0x20] sm:$0xff]
    %v114 = vld [vmem:[#allocation10 + $0x28] sm:$0xff]
    %v115 = vld [vmem:[#allocation10 + $0x30] sm:$0xff]
    %v116 = vld [vmem:[#allocation10 + $0x38] sm:$0xff]
    %v117 = vld [vmem:[#allocation10 + $0x40] sm:$0xff]
    %v118 = vld [vmem:[#allocation10 + $0x48] sm:$0xff]
    %v119 = vld [vmem:[#allocation10 + $0x50] sm:$0xff]
    %v120 = vld [vmem:[#allocation10 + $0x58] sm:$0xff]
    %v121 = vld [vmem:[#allocation10 + $0x60] sm:$0xff]
    %v122 = vld [vmem:[#allocation10 + $0x68] sm:$0xff]
    %v123 = vld [vmem:[#allocation10 + $0x70] sm:$0xff]
    %v124 = vld [vmem:[#allocation10 + $0x78] sm:$0xff]
    %v125 = vld [vmem:[#allocation8] sm:$0x1]
    %v126 = vld [vmem:[#allocation11] sm:$0x1]
    %v127 = vld [vmem:[#allocation2] sm:$0xff]
    %v128 = vld [vmem:[#allocation2 + $0x8] sm:$0xff]
    %v129 = vld [vmem:[#allocation2 + $0x10] sm:$0xff]
    %v130 = vld [vmem:[#allocation2 + $0x18] sm:$0xff]
    %v131 = vld [vmem:[#allocation5] sm:$0xff]
    %v132 = vld [vmem:[#allocation5 + $0x8] sm:$0xff]
    %v133 = vld [vmem:[#allocation5 + $0x10] sm:$0xff]
    %v134 = vld [vmem:[#allocation5 + $0x18] sm:$0xff]
    %v136 = vlaneseq
    %v137 = vshrl.u32 %v136, 7
    %v138 = vsub.s32 0, %v137
    %v139 = vrot.slane %v125, %v138
    %vm141 = vcmask 261120
    %v143 = vsel %vm141, %v127, 0
    %v146 = vsel %vm141, %v128, 0
    %v149 = vsel %vm141, %v129, 0
    %v152 = vsel %vm141, %v130, 0
    %v155 = vsel %vm141, %v131, 0
    %v158 = vsel %vm141, %v132, 0
    %v161 = vsel %vm141, %v133, 0
    %v164 = vsel %vm141, %v134, 0
    %166 = vmatprep.subr.mxu0 0.0
    %167 = vmatpush1.msra.mxu0 %v105
    %168 = vmatprep.subr.mxu0 0.0
    %169 = vmatpush1.msra.mxu0 %v106
    %170 = vmatprep.subr.mxu0 0.0
    %171 = vmatpush1.msra.mxu0 %v107
    %172 = vmatprep.subr.mxu0 0.0
    %173 = vmatpush1.msra.mxu0 %v108
    %174 = vmatprep.subr.mxu0 0.0
    %175 = vmatpush1.msra.mxu0 0.0
    %176 = vmatprep.subr.mxu0 0.0
    %177 = vmatpush1.msra.mxu0 0.0
    %178 = vmatprep.subr.mxu0 0.0
    %179 = vmatpush1.msra.mxu0 0.0
    %180 = vmatprep.subr.mxu0 0.0
    %181 = vmatpush1.msra.mxu0 0.0
    %182 = vmatprep.subr.mxu0 0.0
    %183 = vmatpush1.msra.mxu0 0.0
    %184 = vmatprep.subr.mxu0 0.0
    %185 = vmatpush1.msra.mxu0 0.0
    %186 = vmatprep.subr.mxu0 0.0
    %187 = vmatpush1.msra.mxu0 0.0
    %188 = vmatprep.subr.mxu0 0.0
    %189 = vmatpush1.msra.mxu0 0.0
    %190 = vmatprep.subr.mxu0 0.0
    %191 = vmatpush1.msra.mxu0 0.0
    %192 = vmatprep.subr.mxu0 0.0
    %193 = vmatpush1.msra.mxu0 0.0
    %194 = vmatprep.subr.mxu0 0.0
    %195 = vmatpush1.msra.mxu0 0.0
    %196 = vmatprep.subr.mxu0 0.0
    %197 = vmatpush1.msra.mxu0 0.0
    %198 = vmatprep.subr.mxu0 0.0
    %199 = vmatpush1.msra.mxu0 0.0
    %200 = vmatprep.subr.mxu0 0.0
    %201 = vmatpush1.msra.mxu0 0.0
    %202 = vmatprep.subr.mxu0 0.0
    %203 = vmatpush1.msra.mxu0 0.0
    %204 = vmatprep.subr.mxu0 0.0
    %205 = vmatpush1.msra.mxu0 0.0
    %206 = vmatprep.subr.mxu0 0.0
    %207 = vmatpush1.msra.mxu0 0.0
    %208 = vmatprep.subr.mxu0 0.0
    %209 = vmatpush1.msra.mxu0 0.0
    %210 = vmatprep.subr.mxu0 0.0
    %211 = vmatpush1.msra.mxu0 0.0
    %212 = vmatprep.subr.mxu0 0.0
    %213 = vmatpush1.msra.mxu0 0.0
    %214 = vmatprep.subr.mxu0 0.0
    %215 = vmatpush1.msra.mxu0 0.0
    %216 = vmatprep.subr.mxu0 0.0
    %217 = vmatpush1.msra.mxu0 0.0
    %218 = vmatprep.subr.mxu0 0.0
    %219 = vmatpush1.msra.mxu0 0.0
    %220 = vmatprep.subr.mxu0 0.0
    %221 = vmatpush1.msra.mxu0 0.0
    %222 = vmatprep.subr.mxu0 0.0
    %223 = vmatpush1.msra.mxu0 0.0
    %224 = vmatprep.subr.mxu0 0.0
    %225 = vmatpush1.msra.mxu0 0.0
    %226 = vmatprep.subr.mxu0 0.0
    %227 = vmatpush1.msra.mxu0 0.0
    %228 = vmatprep.subr.mxu0 0.0
    %229 = vmatpush1.msra.mxu0 0.0
    %230 = vmatprep.mubr.f32.mxu0 0.0
    %231 = vmatmul.mubr.f32.gmra.mrb[0].mxu0 %v143
    %v232 = vpop.f32.mrb[0].mxu0
    %v233 = vadd.f32 %v139, %v232
    %v234 = vpop.f32.mrb[0].mxu0
    %235 = vmatprep.mubr.f32.mxu0 0.0
    %236 = vmatmul.mubr.f32.gmra.mrb[0].mxu0 %v146
    %v237 = vpop.f32.mrb[0].mxu0
    %v238 = vadd.f32 %v139, %v237
    %v239 = vpop.f32.mrb[0].mxu0
    %240 = vmatprep.mubr.f32.mxu0 0.0
    %241 = vmatmul.mubr.f32.gmra.mrb[0].mxu0 %v149
    %v242 = vpop.f32.mrb[0].mxu0
    %v243 = vadd.f32 %v139, %v242
    %v244 = vpop.f32.mrb[0].mxu0
    %245 = vmatprep.mubr.f32.mxu0 0.0
    %246 = vmatmul.mubr.f32.gmra.mrb[0].mxu0 %v152
    %v247 = vpop.f32.mrb[0].mxu0
    %v248 = vadd.f32 %v139, %v247
    %v249 = vpop.f32.mrb[0].mxu0
    %250 = vmatprep.mubr.f32.mxu0 0.0
    %251 = vmatmul.mubr.f32.gmra.mrb[0].mxu0 %v155
    %v252 = vpop.f32.mrb[0].mxu0
    %v253 = vadd.f32 %v139, %v252
    %v254 = vpop.f32.mrb[0].mxu0
    %255 = vmatprep.mubr.f32.mxu0 0.0
    %256 = vmatmul.mubr.f32.gmra.mrb[0].mxu0 %v158
    %v257 = vpop.f32.mrb[0].mxu0
    %v258 = vadd.f32 %v139, %v257
    %v259 = vpop.f32.mrb[0].mxu0
    %260 = vmatprep.mubr.f32.mxu0 0.0
    %261 = vmatmul.mubr.f32.gmra.mrb[0].mxu0 %v161
    %v262 = vpop.f32.mrb[0].mxu0
    %v263 = vadd.f32 %v139, %v262
    %v264 = vpop.f32.mrb[0].mxu0
    %265 = vmatprep.mubr.f32.mxu0 0.0
    %266 = vmatmul.mubr.f32.gmra.mrb[0].mxu0 %v164
    %v267 = vpop.f32.mrb[0].mxu0
    %v268 = vadd.f32 %v139, %v267
    %v269 = vpop.f32.mrb[0].mxu0
    %270 = vdwg.mxu0
    %v271 = vmax.f32 %v233, 0.0
    %v272 = vmax.f32 %v238, 0.0
    %v273 = vmax.f32 %v243, 0.0
    %v274 = vmax.f32 %v248, 0.0
    %v275 = vmax.f32 %v253, 0.0
    %v276 = vmax.f32 %v258, 0.0
    %v277 = vmax.f32 %v263, 0.0
    %v278 = vmax.f32 %v268, 0.0
    %v280 = vlaneseq
    %v281 = vshrl.u32 %v280, 7
    %v282 = vsub.s32 0, %v281
    %v283 = vrot.slane %v126, %v282
    %285 = vmatprep.subr.mxu0 0.0
    %286 = vmatpush1.msra.mxu0 %v109
    %287 = vmatprep.subr.mxu0 0.0
    %288 = vmatpush1.msra.mxu0 %v110
    %289 = vmatprep.subr.mxu0 0.0
    %290 = vmatpush1.msra.mxu0 %v111
    %291 = vmatprep.subr.mxu0 0.0
    %292 = vmatpush1.msra.mxu0 %v112
    %293 = vmatprep.subr.mxu0 0.0
    %294 = vmatpush1.msra.mxu0 %v113
    %295 = vmatprep.subr.mxu0 0.0
    %296 = vmatpush1.msra.mxu0 %v114
    %297 = vmatprep.subr.mxu0 0.0
    %298 = vmatpush1.msra.mxu0 %v115
    %299 = vmatprep.subr.mxu0 0.0
    %300 = vmatpush1.msra.mxu0 %v116
    %301 = vmatprep.subr.mxu0 0.0
    %302 = vmatpush1.msra.mxu0 %v117
    %303 = vmatprep.subr.mxu0 0.0
    %304 = vmatpush1.msra.mxu0 %v118
    %305 = vmatprep.subr.mxu0 0.0
    %306 = vmatpush1.msra.mxu0 %v119
    %307 = vmatprep.subr.mxu0 0.0
    %308 = vmatpush1.msra.mxu0 %v120
    %309 = vmatprep.subr.mxu0 0.0
    %310 = vmatpush1.msra.mxu0 %v121
    %311 = vmatprep.subr.mxu0 0.0
    %312 = vmatpush1.msra.mxu0 %v122
    %313 = vmatprep.subr.mxu0 0.0
    %314 = vmatpush1.msra.mxu0 %v123
    %315 = vmatprep.subr.mxu0 0.0
    %316 = vmatpush1.msra.mxu0 %v124
    %317 = vmatprep.subr.mxu0 0.0
    %318 = vmatpush1.msra.mxu0 0.0
    %319 = vmatprep.subr.mxu0 0.0
    %320 = vmatpush1.msra.mxu0 0.0
    %321 = vmatprep.subr.mxu0 0.0
    %322 = vmatpush1.msra.mxu0 0.0
    %323 = vmatprep.subr.mxu0 0.0
    %324 = vmatpush1.msra.mxu0 0.0
    %325 = vmatprep.subr.mxu0 0.0
    %326 = vmatpush1.msra.mxu0 0.0
    %327 = vmatprep.subr.mxu0 0.0
    %328 = vmatpush1.msra.mxu0 0.0
    %329 = vmatprep.subr.mxu0 0.0
    %330 = vmatpush1.msra.mxu0 0.0
    %331 = vmatprep.subr.mxu0 0.0
    %332 = vmatpush1.msra.mxu0 0.0
    %333 = vmatprep.subr.mxu0 0.0
    %334 = vmatpush1.msra.mxu0 0.0
    %335 = vmatprep.subr.mxu0 0.0
    %336 = vmatpush1.msra.mxu0 0.0
    %337 = vmatprep.subr.mxu0 0.0
    %338 = vmatpush1.msra.mxu0 0.0
    %339 = vmatprep.subr.mxu0 0.0
    %340 = vmatpush1.msra.mxu0 0.0
    %341 = vmatprep.subr.mxu0 0.0
    %342 = vmatpush1.msra.mxu0 0.0
    %343 = vmatprep.subr.mxu0 0.0
    %344 = vmatpush1.msra.mxu0 0.0
    %345 = vmatprep.subr.mxu0 0.0
    %346 = vmatpush1.msra.mxu0 0.0
    %347 = vmatprep.subr.mxu0 0.0
    %348 = vmatpush1.msra.mxu0 0.0
    %349 = vmatprep.mubr.f32.mxu0 0.0
    %350 = vmatmul.mubr.f32.gmra.mrb[0].mxu0 %v271
    %v351 = vpop.f32.mrb[0].mxu0
    %v352 = vadd.f32 %v283, %v351
    %v353 = vpop.f32.mrb[0].mxu0
    %354 = vmatprep.mubr.f32.mxu0 0.0
    %355 = vmatmul.mubr.f32.gmra.mrb[0].mxu0 %v272
    %v356 = vpop.f32.mrb[0].mxu0
    %v357 = vadd.f32 %v283, %v356
    %v358 = vpop.f32.mrb[0].mxu0
    %359 = vmatprep.mubr.f32.mxu0 0.0
    %360 = vmatmul.mubr.f32.gmra.mrb[0].mxu0 %v273
    %v361 = vpop.f32.mrb[0].mxu0
    %v362 = vadd.f32 %v283, %v361
    %v363 = vpop.f32.mrb[0].mxu0
    %364 = vmatprep.mubr.f32.mxu0 0.0
    %365 = vmatmul.mubr.f32.gmra.mrb[0].mxu0 %v274
    %v366 = vpop.f32.mrb[0].mxu0
    %v367 = vadd.f32 %v283, %v366
    %v368 = vpop.f32.mrb[0].mxu0
    %369 = vmatprep.mubr.f32.mxu0 0.0
    %370 = vmatmul.mubr.f32.gmra.mrb[0].mxu0 %v275
    %v371 = vpop.f32.mrb[0].mxu0
    %v372 = vadd.f32 %v283, %v371
    %v373 = vpop.f32.mrb[0].mxu0
    %374 = vmatprep.mubr.f32.mxu0 0.0
    %375 = vmatmul.mubr.f32.gmra.mrb[0].mxu0 %v276
    %v376 = vpop.f32.mrb[0].mxu0
    %v377 = vadd.f32 %v283, %v376
    %v378 = vpop.f32.mrb[0].mxu0
    %379 = vmatprep.mubr.f32.mxu0 0.0
    %380 = vmatmul.mubr.f32.gmra.mrb[0].mxu0 %v277
    %v381 = vpop.f32.mrb[0].mxu0
    %v382 = vadd.f32 %v283, %v381
    %v383 = vpop.f32.mrb[0].mxu0
    %384 = vmatprep.mubr.f32.mxu0 0.0
    %385 = vmatmul.mubr.f32.gmra.mrb[0].mxu0 %v278
    %v386 = vpop.f32.mrb[0].mxu0
    %v387 = vadd.f32 %v283, %v386
    %v388 = vpop.f32.mrb[0].mxu0
    %389 = vdwg.mxu0
    %v390 = vmax.f32 %v352, 0.0
    %v391 = vmax.f32 %v357, 0.0
    %v392 = vmax.f32 %v362, 0.0
    %v393 = vmax.f32 %v367, 0.0
    %v394 = vmax.f32 %v372, 0.0
    %v395 = vmax.f32 %v377, 0.0
    %v396 = vmax.f32 %v382, 0.0
    %v397 = vmax.f32 %v387, 0.0
    %398 = vmatprep.subr.mxu0 0.0
    %399 = vmatpush1.xpose.msra.mxu0 %v394
    %400 = vmatprep.subr.mxu0 0.0
    %401 = vmatpush1.xpose.msra.mxu0 0.0
    %402 = vmatprep.subr.mxu0 0.0
    %403 = vmatpush1.xpose.msra.mxu0 0.0
    %404 = vmatprep.subr.mxu0 0.0
    %405 = vmatpush1.xpose.msra.mxu0 0.0
    %406 = vmatprep.subr.mxu0 0.0
    %407 = vmatpush1.xpose.msra.mxu0 0.0
    %408 = vmatprep.subr.mxu0 0.0
    %409 = vmatpush1.xpose.msra.mxu0 0.0
    %410 = vmatprep.subr.mxu0 0.0
    %411 = vmatpush1.xpose.msra.mxu0 0.0
    %412 = vmatprep.subr.mxu0 0.0
    %413 = vmatpush1.xpose.msra.mxu0 0.0
    %414 = vmatprep.subr.mxu0 0.0
    %415 = vmatpush1.xpose.msra.mxu0 0.0
    %416 = vmatprep.subr.mxu0 0.0
    %417 = vmatpush1.xpose.msra.mxu0 0.0
    %418 = vmatprep.subr.mxu0 0.0
    %419 = vmatpush1.xpose.msra.mxu0 0.0
    %420 = vmatprep.subr.mxu0 0.0
    %421 = vmatpush1.xpose.msra.mxu0 0.0
    %422 = vmatprep.subr.mxu0 0.0
    %423 = vmatpush1.xpose.msra.mxu0 0.0
    %424 = vmatprep.subr.mxu0 0.0
    %425 = vmatpush1.xpose.msra.mxu0 0.0
    %426 = vmatprep.subr.mxu0 0.0
    %427 = vmatpush1.xpose.msra.mxu0 0.0
    %428 = vmatprep.subr.mxu0 0.0
    %429 = vmatpush1.xpose.msra.mxu0 0.0
    %430 = vmatprep.subr.mxu0 0.0
    %431 = vmatpush1.xpose.msra.mxu0 0.0
    %432 = vmatprep.subr.mxu0 0.0
    %433 = vmatpush1.xpose.msra.mxu0 0.0
    %434 = vmatprep.subr.mxu0 0.0
    %435 = vmatpush1.xpose.msra.mxu0 0.0
    %436 = vmatprep.subr.mxu0 0.0
    %437 = vmatpush1.xpose.msra.mxu0 0.0
    %438 = vmatprep.subr.mxu0 0.0
    %439 = vmatpush1.xpose.msra.mxu0 0.0
    %440 = vmatprep.subr.mxu0 0.0
    %441 = vmatpush1.xpose.msra.mxu0 0.0
    %442 = vmatprep.subr.mxu0 0.0
    %443 = vmatpush1.xpose.msra.mxu0 0.0
    %444 = vmatprep.subr.mxu0 0.0
    %445 = vmatpush1.xpose.msra.mxu0 0.0
    %446 = vmatprep.subr.mxu0 0.0
    %447 = vmatpush1.xpose.msra.mxu0 0.0
    %448 = vmatprep.subr.mxu0 0.0
    %449 = vmatpush1.xpose.msra.mxu0 0.0
    %450 = vmatprep.subr.mxu0 0.0
    %451 = vmatpush1.xpose.msra.mxu0 0.0
    %452 = vmatprep.subr.mxu0 0.0
    %453 = vmatpush1.xpose.msra.mxu0 0.0
    %454 = vmatprep.subr.mxu0 0.0
    %455 = vmatpush1.xpose.msra.mxu0 0.0
    %456 = vmatprep.subr.mxu0 0.0
    %457 = vmatpush1.xpose.msra.mxu0 0.0
    %458 = vmatprep.subr.mxu0 0.0
    %459 = vmatpush1.xpose.msra.mxu0 0.0
    %460 = vmatprep.subr.mxu0 0.0
    %461 = vmatpush1.xpose.msra.mxu0 0.0
    %462 = vmatprep.mubr.f32.mxu0 0.0
    %463 = vmatmul.mubr.f32.gmra.mrb[0].mxu0 %v390
    %v464 = vpop.f32.mrb[0].mxu0
    %v465 = vadd.f32 0.0, %v464
    %v466 = vpop.f32.mrb[0].mxu0
    %467 = vdwg.mxu0
    %468 = vmatprep.subr.mxu0 0.0
    %469 = vmatpush1.xpose.msra.mxu0 %v395
    %470 = vmatprep.subr.mxu0 0.0
    %471 = vmatpush1.xpose.msra.mxu0 0.0
    %472 = vmatprep.subr.mxu0 0.0
    %473 = vmatpush1.xpose.msra.mxu0 0.0
    %474 = vmatprep.subr.mxu0 0.0
    %475 = vmatpush1.xpose.msra.mxu0 0.0
    %476 = vmatprep.subr.mxu0 0.0
    %477 = vmatpush1.xpose.msra.mxu0 0.0
    %478 = vmatprep.subr.mxu0 0.0
    %479 = vmatpush1.xpose.msra.mxu0 0.0
    %480 = vmatprep.subr.mxu0 0.0
    %481 = vmatpush1.xpose.msra.mxu0 0.0
    %482 = vmatprep.subr.mxu0 0.0
    %483 = vmatpush1.xpose.msra.mxu0 0.0
    %484 = vmatprep.subr.mxu0 0.0
    %485 = vmatpush1.xpose.msra.mxu0 0.0
    %486 = vmatprep.subr.mxu0 0.0
    %487 = vmatpush1.xpose.msra.mxu0 0.0
    %488 = vmatprep.subr.mxu0 0.0
    %489 = vmatpush1.xpose.msra.mxu0 0.0
    %490 = vmatprep.subr.mxu0 0.0
    %491 = vmatpush1.xpose.msra.mxu0 0.0
    %492 = vmatprep.subr.mxu0 0.0
    %493 = vmatpush1.xpose.msra.mxu0 0.0
    %494 = vmatprep.subr.mxu0 0.0
    %495 = vmatpush1.xpose.msra.mxu0 0.0
    %496 = vmatprep.subr.mxu0 0.0
    %497 = vmatpush1.xpose.msra.mxu0 0.0
    %498 = vmatprep.subr.mxu0 0.0
    %499 = vmatpush1.xpose.msra.mxu0 0.0
    %500 = vmatprep.subr.mxu0 0.0
    %501 = vmatpush1.xpose.msra.mxu0 0.0
    %502 = vmatprep.subr.mxu0 0.0
    %503 = vmatpush1.xpose.msra.mxu0 0.0
    %504 = vmatprep.subr.mxu0 0.0
    %505 = vmatpush1.xpose.msra.mxu0 0.0
    %506 = vmatprep.subr.mxu0 0.0
    %507 = vmatpush1.xpose.msra.mxu0 0.0
    %508 = vmatprep.subr.mxu0 0.0
    %509 = vmatpush1.xpose.msra.mxu0 0.0
    %510 = vmatprep.subr.mxu0 0.0
    %511 = vmatpush1.xpose.msra.mxu0 0.0
    %512 = vmatprep.subr.mxu0 0.0
    %513 = vmatpush1.xpose.msra.mxu0 0.0
    %514 = vmatprep.subr.mxu0 0.0
    %515 = vmatpush1.xpose.msra.mxu0 0.0
    %516 = vmatprep.subr.mxu0 0.0
    %517 = vmatpush1.xpose.msra.mxu0 0.0
    %518 = vmatprep.subr.mxu0 0.0
    %519 = vmatpush1.xpose.msra.mxu0 0.0
    %520 = vmatprep.subr.mxu0 0.0
    %521 = vmatpush1.xpose.msra.mxu0 0.0
    %522 = vmatprep.subr.mxu0 0.0
    %523 = vmatpush1.xpose.msra.mxu0 0.0
    %524 = vmatprep.subr.mxu0 0.0
    %525 = vmatpush1.xpose.msra.mxu0 0.0
    %526 = vmatprep.subr.mxu0 0.0
    %527 = vmatpush1.xpose.msra.mxu0 0.0
    %528 = vmatprep.subr.mxu0 0.0
    %529 = vmatpush1.xpose.msra.mxu0 0.0
    %530 = vmatprep.subr.mxu0 0.0
    %531 = vmatpush1.xpose.msra.mxu0 0.0
    %532 = vmatprep.mubr.f32.mxu0 0.0
    %533 = vmatmul.mubr.f32.gmra.mrb[0].mxu0 %v391
    %v534 = vpop.f32.mrb[0].mxu0
    %v535 = vadd.f32 0.0, %v534
    %v536 = vpop.f32.mrb[0].mxu0
    %537 = vdwg.mxu0
    %538 = vmatprep.subr.mxu0 0.0
    %539 = vmatpush1.xpose.msra.mxu0 %v396
    %540 = vmatprep.subr.mxu0 0.0
    %541 = vmatpush1.xpose.msra.mxu0 0.0
    %542 = vmatprep.subr.mxu0 0.0
    %543 = vmatpush1.xpose.msra.mxu0 0.0
    %544 = vmatprep.subr.mxu0 0.0
    %545 = vmatpush1.xpose.msra.mxu0 0.0
    %546 = vmatprep.subr.mxu0 0.0
    %547 = vmatpush1.xpose.msra.mxu0 0.0
    %548 = vmatprep.subr.mxu0 0.0
    %549 = vmatpush1.xpose.msra.mxu0 0.0
    %550 = vmatprep.subr.mxu0 0.0
    %551 = vmatpush1.xpose.msra.mxu0 0.0
    %552 = vmatprep.subr.mxu0 0.0
    %553 = vmatpush1.xpose.msra.mxu0 0.0
    %554 = vmatprep.subr.mxu0 0.0
    %555 = vmatpush1.xpose.msra.mxu0 0.0
    %556 = vmatprep.subr.mxu0 0.0
    %557 = vmatpush1.xpose.msra.mxu0 0.0
    %558 = vmatprep.subr.mxu0 0.0
    %559 = vmatpush1.xpose.msra.mxu0 0.0
    %560 = vmatprep.subr.mxu0 0.0
    %561 = vmatpush1.xpose.msra.mxu0 0.0
    %562 = vmatprep.subr.mxu0 0.0
    %563 = vmatpush1.xpose.msra.mxu0 0.0
    %564 = vmatprep.subr.mxu0 0.0
    %565 = vmatpush1.xpose.msra.mxu0 0.0
    %566 = vmatprep.subr.mxu0 0.0
    %567 = vmatpush1.xpose.msra.mxu0 0.0
    %568 = vmatprep.subr.mxu0 0.0
    %569 = vmatpush1.xpose.msra.mxu0 0.0
    %570 = vmatprep.subr.mxu0 0.0
    %571 = vmatpush1.xpose.msra.mxu0 0.0
    %572 = vmatprep.subr.mxu0 0.0
    %573 = vmatpush1.xpose.msra.mxu0 0.0
    %574 = vmatprep.subr.mxu0 0.0
    %575 = vmatpush1.xpose.msra.mxu0 0.0
    %576 = vmatprep.subr.mxu0 0.0
    %577 = vmatpush1.xpose.msra.mxu0 0.0
    %578 = vmatprep.subr.mxu0 0.0
    %579 = vmatpush1.xpose.msra.mxu0 0.0
    %580 = vmatprep.subr.mxu0 0.0
    %581 = vmatpush1.xpose.msra.mxu0 0.0
    %582 = vmatprep.subr.mxu0 0.0
    %583 = vmatpush1.xpose.msra.mxu0 0.0
    %584 = vmatprep.subr.mxu0 0.0
    %585 = vmatpush1.xpose.msra.mxu0 0.0
    %586 = vmatprep.subr.mxu0 0.0
    %587 = vmatpush1.xpose.msra.mxu0 0.0
    %588 = vmatprep.subr.mxu0 0.0
    %589 = vmatpush1.xpose.msra.mxu0 0.0
    %590 = vmatprep.subr.mxu0 0.0
    %591 = vmatpush1.xpose.msra.mxu0 0.0
    %592 = vmatprep.subr.mxu0 0.0
    %593 = vmatpush1.xpose.msra.mxu0 0.0
    %594 = vmatprep.subr.mxu0 0.0
    %595 = vmatpush1.xpose.msra.mxu0 0.0
    %596 = vmatprep.subr.mxu0 0.0
    %597 = vmatpush1.xpose.msra.mxu0 0.0
    %598 = vmatprep.subr.mxu0 0.0
    %599 = vmatpush1.xpose.msra.mxu0 0.0
    %600 = vmatprep.subr.mxu0 0.0
    %601 = vmatpush1.xpose.msra.mxu0 0.0
    %602 = vmatprep.mubr.f32.mxu0 0.0
    %603 = vmatmul.mubr.f32.gmra.mrb[0].mxu0 %v392
    %v604 = vpop.f32.mrb[0].mxu0
    %v605 = vadd.f32 0.0, %v604
    %v606 = vpop.f32.mrb[0].mxu0
    %607 = vdwg.mxu0
    %608 = vmatprep.subr.mxu0 0.0
    %609 = vmatpush1.xpose.msra.mxu0 %v397
    %610 = vmatprep.subr.mxu0 0.0
    %611 = vmatpush1.xpose.msra.mxu0 0.0
    %612 = vmatprep.subr.mxu0 0.0
    %613 = vmatpush1.xpose.msra.mxu0 0.0
    %614 = vmatprep.subr.mxu0 0.0
    %615 = vmatpush1.xpose.msra.mxu0 0.0
    %616 = vmatprep.subr.mxu0 0.0
    %617 = vmatpush1.xpose.msra.mxu0 0.0
    %618 = vmatprep.subr.mxu0 0.0
    %619 = vmatpush1.xpose.msra.mxu0 0.0
    %620 = vmatprep.subr.mxu0 0.0
    %621 = vmatpush1.xpose.msra.mxu0 0.0
    %622 = vmatprep.subr.mxu0 0.0
    %623 = vmatpush1.xpose.msra.mxu0 0.0
    %624 = vmatprep.subr.mxu0 0.0
    %625 = vmatpush1.xpose.msra.mxu0 0.0
    %626 = vmatprep.subr.mxu0 0.0
    %627 = vmatpush1.xpose.msra.mxu0 0.0
    %628 = vmatprep.subr.mxu0 0.0
    %629 = vmatpush1.xpose.msra.mxu0 0.0
    %630 = vmatprep.subr.mxu0 0.0
    %631 = vmatpush1.xpose.msra.mxu0 0.0
    %632 = vmatprep.subr.mxu0 0.0
    %633 = vmatpush1.xpose.msra.mxu0 0.0
    %634 = vmatprep.subr.mxu0 0.0
    %635 = vmatpush1.xpose.msra.mxu0 0.0
    %636 = vmatprep.subr.mxu0 0.0
    %637 = vmatpush1.xpose.msra.mxu0 0.0
    %638 = vmatprep.subr.mxu0 0.0
    %639 = vmatpush1.xpose.msra.mxu0 0.0
    %640 = vmatprep.subr.mxu0 0.0
    %641 = vmatpush1.xpose.msra.mxu0 0.0
    %642 = vmatprep.subr.mxu0 0.0
    %643 = vmatpush1.xpose.msra.mxu0 0.0
    %644 = vmatprep.subr.mxu0 0.0
    %645 = vmatpush1.xpose.msra.mxu0 0.0
    %646 = vmatprep.subr.mxu0 0.0
    %647 = vmatpush1.xpose.msra.mxu0 0.0
    %648 = vmatprep.subr.mxu0 0.0
    %649 = vmatpush1.xpose.msra.mxu0 0.0
    %650 = vmatprep.subr.mxu0 0.0
    %651 = vmatpush1.xpose.msra.mxu0 0.0
    %652 = vmatprep.subr.mxu0 0.0
    %653 = vmatpush1.xpose.msra.mxu0 0.0
    %654 = vmatprep.subr.mxu0 0.0
    %655 = vmatpush1.xpose.msra.mxu0 0.0
    %656 = vmatprep.subr.mxu0 0.0
    %657 = vmatpush1.xpose.msra.mxu0 0.0
    %658 = vmatprep.subr.mxu0 0.0
    %659 = vmatpush1.xpose.msra.mxu0 0.0
    %660 = vmatprep.subr.mxu0 0.0
    %661 = vmatpush1.xpose.msra.mxu0 0.0
    %662 = vmatprep.subr.mxu0 0.0
    %663 = vmatpush1.xpose.msra.mxu0 0.0
    %664 = vmatprep.subr.mxu0 0.0
    %665 = vmatpush1.xpose.msra.mxu0 0.0
    %666 = vmatprep.subr.mxu0 0.0
    %667 = vmatpush1.xpose.msra.mxu0 0.0
    %668 = vmatprep.subr.mxu0 0.0
    %669 = vmatpush1.xpose.msra.mxu0 0.0
    %670 = vmatprep.subr.mxu0 0.0
    %671 = vmatpush1.xpose.msra.mxu0 0.0
    %672 = vmatprep.mubr.f32.mxu0 0.0
    %673 = vmatmul.mubr.f32.gmra.mrb[0].mxu0 %v393
    %v674 = vpop.f32.mrb[0].mxu0
    %v675 = vadd.f32 0.0, %v674
    %v676 = vpop.f32.mrb[0].mxu0
    %677 = vdwg.mxu0
    %678 = vmatprep.subr.mxu0 0.0
    %679 = vmatpush1.xpose.msra.mxu0 %v390
    %680 = vmatprep.subr.mxu0 0.0
    %681 = vmatpush1.xpose.msra.mxu0 0.0
    %682 = vmatprep.subr.mxu0 0.0
    %683 = vmatpush1.xpose.msra.mxu0 0.0
    %684 = vmatprep.subr.mxu0 0.0
    %685 = vmatpush1.xpose.msra.mxu0 0.0
    %686 = vmatprep.subr.mxu0 0.0
    %687 = vmatpush1.xpose.msra.mxu0 0.0
    %688 = vmatprep.subr.mxu0 0.0
    %689 = vmatpush1.xpose.msra.mxu0 0.0
    %690 = vmatprep.subr.mxu0 0.0
    %691 = vmatpush1.xpose.msra.mxu0 0.0
    %692 = vmatprep.subr.mxu0 0.0
    %693 = vmatpush1.xpose.msra.mxu0 0.0
    %694 = vmatprep.subr.mxu0 0.0
    %695 = vmatpush1.xpose.msra.mxu0 0.0
    %696 = vmatprep.subr.mxu0 0.0
    %697 = vmatpush1.xpose.msra.mxu0 0.0
    %698 = vmatprep.subr.mxu0 0.0
    %699 = vmatpush1.xpose.msra.mxu0 0.0
    %700 = vmatprep.subr.mxu0 0.0
    %701 = vmatpush1.xpose.msra.mxu0 0.0
    %702 = vmatprep.subr.mxu0 0.0
    %703 = vmatpush1.xpose.msra.mxu0 0.0
    %704 = vmatprep.subr.mxu0 0.0
    %705 = vmatpush1.xpose.msra.mxu0 0.0
    %706 = vmatprep.subr.mxu0 0.0
    %707 = vmatpush1.xpose.msra.mxu0 0.0
    %708 = vmatprep.subr.mxu0 0.0
    %709 = vmatpush1.xpose.msra.mxu0 0.0
    %710 = vmatprep.subr.mxu0 0.0
    %711 = vmatpush1.xpose.msra.mxu0 0.0
    %712 = vmatprep.subr.mxu0 0.0
    %713 = vmatpush1.xpose.msra.mxu0 0.0
    %714 = vmatprep.subr.mxu0 0.0
    %715 = vmatpush1.xpose.msra.mxu0 0.0
    %716 = vmatprep.subr.mxu0 0.0
    %717 = vmatpush1.xpose.msra.mxu0 0.0
    %718 = vmatprep.subr.mxu0 0.0
    %719 = vmatpush1.xpose.msra.mxu0 0.0
    %720 = vmatprep.subr.mxu0 0.0
    %721 = vmatpush1.xpose.msra.mxu0 0.0
    %722 = vmatprep.subr.mxu0 0.0
    %723 = vmatpush1.xpose.msra.mxu0 0.0
    %724 = vmatprep.subr.mxu0 0.0
    %725 = vmatpush1.xpose.msra.mxu0 0.0
    %726 = vmatprep.subr.mxu0 0.0
    %727 = vmatpush1.xpose.msra.mxu0 0.0
    %728 = vmatprep.subr.mxu0 0.0
    %729 = vmatpush1.xpose.msra.mxu0 0.0
    %730 = vmatprep.subr.mxu0 0.0
    %731 = vmatpush1.xpose.msra.mxu0 0.0
    %732 = vmatprep.subr.mxu0 0.0
    %733 = vmatpush1.xpose.msra.mxu0 0.0
    %734 = vmatprep.subr.mxu0 0.0
    %735 = vmatpush1.xpose.msra.mxu0 0.0
    %736 = vmatprep.subr.mxu0 0.0
    %737 = vmatpush1.xpose.msra.mxu0 0.0
    %738 = vmatprep.subr.mxu0 0.0
    %739 = vmatpush1.xpose.msra.mxu0 0.0
    %740 = vmatprep.subr.mxu0 0.0
    %741 = vmatpush1.xpose.msra.mxu0 0.0
    %742 = vmatprep.mubr.f32.mxu0 0.0
    %743 = vmatmul.mubr.f32.gmra.mrb[0].mxu0 %v394
    %v744 = vpop.f32.mrb[0].mxu0
    %v745 = vadd.f32 0.0, %v744
    %v746 = vpop.f32.mrb[0].mxu0
    %747 = vdwg.mxu0
    %748 = vmatprep.subr.mxu0 0.0
    %749 = vmatpush1.xpose.msra.mxu0 %v391
    %750 = vmatprep.subr.mxu0 0.0
    %751 = vmatpush1.xpose.msra.mxu0 0.0
    %752 = vmatprep.subr.mxu0 0.0
    %753 = vmatpush1.xpose.msra.mxu0 0.0
    %754 = vmatprep.subr.mxu0 0.0
    %755 = vmatpush1.xpose.msra.mxu0 0.0
    %756 = vmatprep.subr.mxu0 0.0
    %757 = vmatpush1.xpose.msra.mxu0 0.0
    %758 = vmatprep.subr.mxu0 0.0
    %759 = vmatpush1.xpose.msra.mxu0 0.0
    %760 = vmatprep.subr.mxu0 0.0
    %761 = vmatpush1.xpose.msra.mxu0 0.0
    %762 = vmatprep.subr.mxu0 0.0
    %763 = vmatpush1.xpose.msra.mxu0 0.0
    %764 = vmatprep.subr.mxu0 0.0
    %765 = vmatpush1.xpose.msra.mxu0 0.0
    %766 = vmatprep.subr.mxu0 0.0
    %767 = vmatpush1.xpose.msra.mxu0 0.0
    %768 = vmatprep.subr.mxu0 0.0
    %769 = vmatpush1.xpose.msra.mxu0 0.0
    %770 = vmatprep.subr.mxu0 0.0
    %771 = vmatpush1.xpose.msra.mxu0 0.0
    %772 = vmatprep.subr.mxu0 0.0
    %773 = vmatpush1.xpose.msra.mxu0 0.0
    %774 = vmatprep.subr.mxu0 0.0
    %775 = vmatpush1.xpose.msra.mxu0 0.0
    %776 = vmatprep.subr.mxu0 0.0
    %777 = vmatpush1.xpose.msra.mxu0 0.0
    %778 = vmatprep.subr.mxu0 0.0
    %779 = vmatpush1.xpose.msra.mxu0 0.0
    %780 = vmatprep.subr.mxu0 0.0
    %781 = vmatpush1.xpose.msra.mxu0 0.0
    %782 = vmatprep.subr.mxu0 0.0
    %783 = vmatpush1.xpose.msra.mxu0 0.0
    %784 = vmatprep.subr.mxu0 0.0
    %785 = vmatpush1.xpose.msra.mxu0 0.0
    %786 = vmatprep.subr.mxu0 0.0
    %787 = vmatpush1.xpose.msra.mxu0 0.0
    %788 = vmatprep.subr.mxu0 0.0
    %789 = vmatpush1.xpose.msra.mxu0 0.0
    %790 = vmatprep.subr.mxu0 0.0
    %791 = vmatpush1.xpose.msra.mxu0 0.0
    %792 = vmatprep.subr.mxu0 0.0
    %793 = vmatpush1.xpose.msra.mxu0 0.0
    %794 = vmatprep.subr.mxu0 0.0
    %795 = vmatpush1.xpose.msra.mxu0 0.0
    %796 = vmatprep.subr.mxu0 0.0
    %797 = vmatpush1.xpose.msra.mxu0 0.0
    %798 = vmatprep.subr.mxu0 0.0
    %799 = vmatpush1.xpose.msra.mxu0 0.0
    %800 = vmatprep.subr.mxu0 0.0
    %801 = vmatpush1.xpose.msra.mxu0 0.0
    %802 = vmatprep.subr.mxu0 0.0
    %803 = vmatpush1.xpose.msra.mxu0 0.0
    %804 = vmatprep.subr.mxu0 0.0
    %805 = vmatpush1.xpose.msra.mxu0 0.0
    %806 = vmatprep.subr.mxu0 0.0
    %807 = vmatpush1.xpose.msra.mxu0 0.0
    %808 = vmatprep.subr.mxu0 0.0
    %809 = vmatpush1.xpose.msra.mxu0 0.0
    %810 = vmatprep.subr.mxu0 0.0
    %811 = vmatpush1.xpose.msra.mxu0 0.0
    %812 = vmatprep.mubr.f32.mxu0 0.0
    %813 = vmatmul.mubr.f32.gmra.mrb[0].mxu0 %v395
    %v814 = vpop.f32.mrb[0].mxu0
    %v815 = vadd.f32 0.0, %v814
    %v816 = vpop.f32.mrb[0].mxu0
    %817 = vdwg.mxu0
    %818 = vmatprep.subr.mxu0 0.0
    %819 = vmatpush1.xpose.msra.mxu0 %v392
    %820 = vmatprep.subr.mxu0 0.0
    %821 = vmatpush1.xpose.msra.mxu0 0.0
    %822 = vmatprep.subr.mxu0 0.0
    %823 = vmatpush1.xpose.msra.mxu0 0.0
    %824 = vmatprep.subr.mxu0 0.0
    %825 = vmatpush1.xpose.msra.mxu0 0.0
    %826 = vmatprep.subr.mxu0 0.0
    %827 = vmatpush1.xpose.msra.mxu0 0.0
    %828 = vmatprep.subr.mxu0 0.0
    %829 = vmatpush1.xpose.msra.mxu0 0.0
    %830 = vmatprep.subr.mxu0 0.0
    %831 = vmatpush1.xpose.msra.mxu0 0.0
    %832 = vmatprep.subr.mxu0 0.0
    %833 = vmatpush1.xpose.msra.mxu0 0.0
    %834 = vmatprep.subr.mxu0 0.0
    %835 = vmatpush1.xpose.msra.mxu0 0.0
    %836 = vmatprep.subr.mxu0 0.0
    %837 = vmatpush1.xpose.msra.mxu0 0.0
    %838 = vmatprep.subr.mxu0 0.0
    %839 = vmatpush1.xpose.msra.mxu0 0.0
    %840 = vmatprep.subr.mxu0 0.0
    %841 = vmatpush1.xpose.msra.mxu0 0.0
    %842 = vmatprep.subr.mxu0 0.0
    %843 = vmatpush1.xpose.msra.mxu0 0.0
    %844 = vmatprep.subr.mxu0 0.0
    %845 = vmatpush1.xpose.msra.mxu0 0.0
    %846 = vmatprep.subr.mxu0 0.0
    %847 = vmatpush1.xpose.msra.mxu0 0.0
    %848 = vmatprep.subr.mxu0 0.0
    %849 = vmatpush1.xpose.msra.mxu0 0.0
    %850 = vmatprep.subr.mxu0 0.0
    %851 = vmatpush1.xpose.msra.mxu0 0.0
    %852 = vmatprep.subr.mxu0 0.0
    %853 = vmatpush1.xpose.msra.mxu0 0.0
    %854 = vmatprep.subr.mxu0 0.0
    %855 = vmatpush1.xpose.msra.mxu0 0.0
    %856 = vmatprep.subr.mxu0 0.0
    %857 = vmatpush1.xpose.msra.mxu0 0.0
    %858 = vmatprep.subr.mxu0 0.0
    %859 = vmatpush1.xpose.msra.mxu0 0.0
    %860 = vmatprep.subr.mxu0 0.0
    %861 = vmatpush1.xpose.msra.mxu0 0.0
    %862 = vmatprep.subr.mxu0 0.0
    %863 = vmatpush1.xpose.msra.mxu0 0.0
    %864 = vmatprep.subr.mxu0 0.0
    %865 = vmatpush1.xpose.msra.mxu0 0.0
    %866 = vmatprep.subr.mxu0 0.0
    %867 = vmatpush1.xpose.msra.mxu0 0.0
    %868 = vmatprep.subr.mxu0 0.0
    %869 = vmatpush1.xpose.msra.mxu0 0.0
    %870 = vmatprep.subr.mxu0 0.0
    %871 = vmatpush1.xpose.msra.mxu0 0.0
    %872 = vmatprep.subr.mxu0 0.0
    %873 = vmatpush1.xpose.msra.mxu0 0.0
    %874 = vmatprep.subr.mxu0 0.0
    %875 = vmatpush1.xpose.msra.mxu0 0.0
    %876 = vmatprep.subr.mxu0 0.0
    %877 = vmatpush1.xpose.msra.mxu0 0.0
    %878 = vmatprep.subr.mxu0 0.0
    %879 = vmatpush1.xpose.msra.mxu0 0.0
    %880 = vmatprep.subr.mxu0 0.0
    %881 = vmatpush1.xpose.msra.mxu0 0.0
    %882 = vmatprep.mubr.f32.mxu0 0.0
    %883 = vmatmul.mubr.f32.gmra.mrb[0].mxu0 %v396
    %v884 = vpop.f32.mrb[0].mxu0
    %v885 = vadd.f32 0.0, %v884
    %v886 = vpop.f32.mrb[0].mxu0
    %887 = vdwg.mxu0
    %888 = vmatprep.subr.mxu0 0.0
    %889 = vmatpush1.xpose.msra.mxu0 %v393
    %890 = vmatprep.subr.mxu0 0.0
    %891 = vmatpush1.xpose.msra.mxu0 0.0
    %892 = vmatprep.subr.mxu0 0.0
    %893 = vmatpush1.xpose.msra.mxu0 0.0
    %894 = vmatprep.subr.mxu0 0.0
    %895 = vmatpush1.xpose.msra.mxu0 0.0
    %896 = vmatprep.subr.mxu0 0.0
    %897 = vmatpush1.xpose.msra.mxu0 0.0
    %898 = vmatprep.subr.mxu0 0.0
    %899 = vmatpush1.xpose.msra.mxu0 0.0
    %900 = vmatprep.subr.mxu0 0.0
    %901 = vmatpush1.xpose.msra.mxu0 0.0
    %902 = vmatprep.subr.mxu0 0.0
    %903 = vmatpush1.xpose.msra.mxu0 0.0
    %904 = vmatprep.subr.mxu0 0.0
    %905 = vmatpush1.xpose.msra.mxu0 0.0
    %906 = vmatprep.subr.mxu0 0.0
    %907 = vmatpush1.xpose.msra.mxu0 0.0
    %908 = vmatprep.subr.mxu0 0.0
    %909 = vmatpush1.xpose.msra.mxu0 0.0
    %910 = vmatprep.subr.mxu0 0.0
    %911 = vmatpush1.xpose.msra.mxu0 0.0
    %912 = vmatprep.subr.mxu0 0.0
    %913 = vmatpush1.xpose.msra.mxu0 0.0
    %914 = vmatprep.subr.mxu0 0.0
    %915 = vmatpush1.xpose.msra.mxu0 0.0
    %916 = vmatprep.subr.mxu0 0.0
    %917 = vmatpush1.xpose.msra.mxu0 0.0
    %918 = vmatprep.subr.mxu0 0.0
    %919 = vmatpush1.xpose.msra.mxu0 0.0
    %920 = vmatprep.subr.mxu0 0.0
    %921 = vmatpush1.xpose.msra.mxu0 0.0
    %922 = vmatprep.subr.mxu0 0.0
    %923 = vmatpush1.xpose.msra.mxu0 0.0
    %924 = vmatprep.subr.mxu0 0.0
    %925 = vmatpush1.xpose.msra.mxu0 0.0
    %926 = vmatprep.subr.mxu0 0.0
    %927 = vmatpush1.xpose.msra.mxu0 0.0
    %928 = vmatprep.subr.mxu0 0.0
    %929 = vmatpush1.xpose.msra.mxu0 0.0
    %930 = vmatprep.subr.mxu0 0.0
    %931 = vmatpush1.xpose.msra.mxu0 0.0
    %932 = vmatprep.subr.mxu0 0.0
    %933 = vmatpush1.xpose.msra.mxu0 0.0
    %934 = vmatprep.subr.mxu0 0.0
    %935 = vmatpush1.xpose.msra.mxu0 0.0
    %936 = vmatprep.subr.mxu0 0.0
    %937 = vmatpush1.xpose.msra.mxu0 0.0
    %938 = vmatprep.subr.mxu0 0.0
    %939 = vmatpush1.xpose.msra.mxu0 0.0
    %940 = vmatprep.subr.mxu0 0.0
    %941 = vmatpush1.xpose.msra.mxu0 0.0
    %942 = vmatprep.subr.mxu0 0.0
    %943 = vmatpush1.xpose.msra.mxu0 0.0
    %944 = vmatprep.subr.mxu0 0.0
    %945 = vmatpush1.xpose.msra.mxu0 0.0
    %946 = vmatprep.subr.mxu0 0.0
    %947 = vmatpush1.xpose.msra.mxu0 0.0
    %948 = vmatprep.subr.mxu0 0.0
    %949 = vmatpush1.xpose.msra.mxu0 0.0
    %950 = vmatprep.subr.mxu0 0.0
    %951 = vmatpush1.xpose.msra.mxu0 0.0
    %952 = vmatprep.mubr.f32.mxu0 0.0
    %953 = vmatmul.mubr.f32.gmra.mrb[0].mxu0 %v397
    %v954 = vpop.f32.mrb[0].mxu0
    %v955 = vadd.f32 0.0, %v954
    %v956 = vpop.f32.mrb[0].mxu0
    %957 = vdwg.mxu0
    %vm958 = vcmask 64512
    %v959 = vsel %vm958, %v465, -inf
    %960 = vmax.xlane.f32.xlu0 %v959
    %v961 = vpop.xlane.xlu0 %960
    %v962 = vsel %vm958, %v535, -inf
    %963 = vmax.xlane.f32.xlu0 %v962
    %v964 = vpop.xlane.xlu0 %963
    %v965 = vsel %vm958, %v605, -inf
    %966 = vmax.xlane.f32.xlu0 %v965
    %v967 = vpop.xlane.xlu0 %966
    %v968 = vsel %vm958, %v675, -inf
    %969 = vmax.xlane.f32.xlu0 %v968
    %v970 = vpop.xlane.xlu0 %969
    %v971 = vsub.f32 %v465, %v961
    %v972 = vsub.f32 %v535, %v964
    %v973 = vsub.f32 %v605, %v967
    %v974 = vsub.f32 %v675, %v970
    %v975 = vmul.f32 %v971, 1.442695
    %v976 = vpow.pop %v975
    %v977 = vmul.f32 %v972, 1.442695
    %v978 = vpow.pop %v977
    %v979 = vmul.f32 %v973, 1.442695
    %v980 = vpow.pop %v979
    %v981 = vmul.f32 %v974, 1.442695
    %v982 = vpow.pop %v981
    %v983 = vsel %vm958, %v976, 0.0
    %984 = vadd.xlane.f32.xlu0 %v983
    %v985 = vpop.xlane.xlu0 %984
    %v986 = vsel %vm958, %v978, 0.0
    %987 = vadd.xlane.f32.xlu0 %v986
    %v988 = vpop.xlane.xlu0 %987
    %v989 = vsel %vm958, %v980, 0.0
    %990 = vadd.xlane.f32.xlu0 %v989
    %v991 = vpop.xlane.xlu0 %990
    %v992 = vsel %vm958, %v982, 0.0
    %993 = vadd.xlane.f32.xlu0 %v992
    %v994 = vpop.xlane.xlu0 %993
    %v995 = vrcp.pop %v985
    %v996 = vrcp.pop %v988
    %v997 = vrcp.pop %v991
    %v998 = vrcp.pop %v994
    %v999 = vmul.f32 %v976, %v995
    %v1000 = vmul.f32 %v978, %v996
    %v1001 = vmul.f32 %v980, %v997
    %v1002 = vmul.f32 %v982, %v998
    %v1004 = vsel %vm958, %v999, 0
    %1006 = vmatprep.subr.mxu0 0.0
    %1007 = vmatpush1.msra.mxu0 %v131
    %1008 = vmatprep.subr.mxu0 0.0
    %1009 = vmatpush1.msra.mxu0 0.0
    %1010 = vmatprep.subr.mxu0 0.0
    %1011 = vmatpush1.msra.mxu0 0.0
    %1012 = vmatprep.subr.mxu0 0.0
    %1013 = vmatpush1.msra.mxu0 0.0
    %1014 = vmatprep.subr.mxu0 0.0
    %1015 = vmatpush1.msra.mxu0 0.0
    %1016 = vmatprep.subr.mxu0 0.0
    %1017 = vmatpush1.msra.mxu0 0.0
    %1018 = vmatprep.subr.mxu0 0.0
    %1019 = vmatpush1.msra.mxu0 0.0
    %1020 = vmatprep.subr.mxu0 0.0
    %1021 = vmatpush1.msra.mxu0 0.0
    %1022 = vmatprep.subr.mxu0 0.0
    %1023 = vmatpush1.msra.mxu0 0.0
    %1024 = vmatprep.subr.mxu0 0.0
    %1025 = vmatpush1.msra.mxu0 0.0
    %1026 = vmatprep.subr.mxu0 0.0
    %1027 = vmatpush1.msra.mxu0 0.0
    %1028 = vmatprep.subr.mxu0 0.0
    %1029 = vmatpush1.msra.mxu0 0.0
    %1030 = vmatprep.subr.mxu0 0.0
    %1031 = vmatpush1.msra.mxu0 0.0
    %1032 = vmatprep.subr.mxu0 0.0
    %1033 = vmatpush1.msra.mxu0 0.0
    %1034 = vmatprep.subr.mxu0 0.0
    %1035 = vmatpush1.msra.mxu0 0.0
    %1036 = vmatprep.subr.mxu0 0.0
    %1037 = vmatpush1.msra.mxu0 0.0
    %1038 = vmatprep.subr.mxu0 0.0
    %1039 = vmatpush1.msra.mxu0 0.0
    %1040 = vmatprep.subr.mxu0 0.0
    %1041 = vmatpush1.msra.mxu0 0.0
    %1042 = vmatprep.subr.mxu0 0.0
    %1043 = vmatpush1.msra.mxu0 0.0
    %1044 = vmatprep.subr.mxu0 0.0
    %1045 = vmatpush1.msra.mxu0 0.0
    %1046 = vmatprep.subr.mxu0 0.0
    %1047 = vmatpush1.msra.mxu0 0.0
    %1048 = vmatprep.subr.mxu0 0.0
    %1049 = vmatpush1.msra.mxu0 0.0
    %1050 = vmatprep.subr.mxu0 0.0
    %1051 = vmatpush1.msra.mxu0 0.0
    %1052 = vmatprep.subr.mxu0 0.0
    %1053 = vmatpush1.msra.mxu0 0.0
    %1054 = vmatprep.subr.mxu0 0.0
    %1055 = vmatpush1.msra.mxu0 0.0
    %1056 = vmatprep.subr.mxu0 0.0
    %1057 = vmatpush1.msra.mxu0 0.0
    %1058 = vmatprep.subr.mxu0 0.0
    %1059 = vmatpush1.msra.mxu0 0.0
    %1060 = vmatprep.subr.mxu0 0.0
    %1061 = vmatpush1.msra.mxu0 0.0
    %1062 = vmatprep.subr.mxu0 0.0
    %1063 = vmatpush1.msra.mxu0 0.0
    %1064 = vmatprep.subr.mxu0 0.0
    %1065 = vmatpush1.msra.mxu0 0.0
    %1066 = vmatprep.subr.mxu0 0.0
    %1067 = vmatpush1.msra.mxu0 0.0
    %1068 = vmatprep.subr.mxu0 0.0
    %1069 = vmatpush1.msra.mxu0 0.0
    %1070 = vmatprep.mubr.f32.mxu0 0.0
    %1071 = vmatmul.mubr.f32.gmra.mrb[0].mxu0 %v1004
    %v1072 = vpop.f32.mrb[0].mxu0
    %v1073 = vadd.f32 0.0, %v1072
    %v1074 = vpop.f32.mrb[0].mxu0
    %1075 = vdwg.mxu0
    %v1077 = vsel %vm958, %v1000, 0
    %1079 = vmatprep.subr.mxu0 0.0
    %1080 = vmatpush1.msra.mxu0 %v132
    %1081 = vmatprep.subr.mxu0 0.0
    %1082 = vmatpush1.msra.mxu0 0.0
    %1083 = vmatprep.subr.mxu0 0.0
    %1084 = vmatpush1.msra.mxu0 0.0
    %1085 = vmatprep.subr.mxu0 0.0
    %1086 = vmatpush1.msra.mxu0 0.0
    %1087 = vmatprep.subr.mxu0 0.0
    %1088 = vmatpush1.msra.mxu0 0.0
    %1089 = vmatprep.subr.mxu0 0.0
    %1090 = vmatpush1.msra.mxu0 0.0
    %1091 = vmatprep.subr.mxu0 0.0
    %1092 = vmatpush1.msra.mxu0 0.0
    %1093 = vmatprep.subr.mxu0 0.0
    %1094 = vmatpush1.msra.mxu0 0.0
    %1095 = vmatprep.subr.mxu0 0.0
    %1096 = vmatpush1.msra.mxu0 0.0
    %1097 = vmatprep.subr.mxu0 0.0
    %1098 = vmatpush1.msra.mxu0 0.0
    %1099 = vmatprep.subr.mxu0 0.0
    %1100 = vmatpush1.msra.mxu0 0.0
    %1101 = vmatprep.subr.mxu0 0.0
    %1102 = vmatpush1.msra.mxu0 0.0
    %1103 = vmatprep.subr.mxu0 0.0
    %1104 = vmatpush1.msra.mxu0 0.0
    %1105 = vmatprep.subr.mxu0 0.0
    %1106 = vmatpush1.msra.mxu0 0.0
    %1107 = vmatprep.subr.mxu0 0.0
    %1108 = vmatpush1.msra.mxu0 0.0
    %1109 = vmatprep.subr.mxu0 0.0
    %1110 = vmatpush1.msra.mxu0 0.0
    %1111 = vmatprep.subr.mxu0 0.0
    %1112 = vmatpush1.msra.mxu0 0.0
    %1113 = vmatprep.subr.mxu0 0.0
    %1114 = vmatpush1.msra.mxu0 0.0
    %1115 = vmatprep.subr.mxu0 0.0
    %1116 = vmatpush1.msra.mxu0 0.0
    %1117 = vmatprep.subr.mxu0 0.0
    %1118 = vmatpush1.msra.mxu0 0.0
    %1119 = vmatprep.subr.mxu0 0.0
    %1120 = vmatpush1.msra.mxu0 0.0
    %1121 = vmatprep.subr.mxu0 0.0
    %1122 = vmatpush1.msra.mxu0 0.0
    %1123 = vmatprep.subr.mxu0 0.0
    %1124 = vmatpush1.msra.mxu0 0.0
    %1125 = vmatprep.subr.mxu0 0.0
    %1126 = vmatpush1.msra.mxu0 0.0
    %1127 = vmatprep.subr.mxu0 0.0
    %1128 = vmatpush1.msra.mxu0 0.0
    %1129 = vmatprep.subr.mxu0 0.0
    %1130 = vmatpush1.msra.mxu0 0.0
    %1131 = vmatprep.subr.mxu0 0.0
    %1132 = vmatpush1.msra.mxu0 0.0
    %1133 = vmatprep.subr.mxu0 0.0
    %1134 = vmatpush1.msra.mxu0 0.0
    %1135 = vmatprep.subr.mxu0 0.0
    %1136 = vmatpush1.msra.mxu0 0.0
    %1137 = vmatprep.subr.mxu0 0.0
    %1138 = vmatpush1.msra.mxu0 0.0
    %1139 = vmatprep.subr.mxu0 0.0
    %1140 = vmatpush1.msra.mxu0 0.0
    %1141 = vmatprep.subr.mxu0 0.0
    %1142 = vmatpush1.msra.mxu0 0.0
    %1143 = vmatprep.mubr.f32.mxu0 0.0
    %1144 = vmatmul.mubr.f32.gmra.mrb[0].mxu0 %v1077
    %v1145 = vpop.f32.mrb[0].mxu0
    %v1146 = vadd.f32 0.0, %v1145
    %v1147 = vpop.f32.mrb[0].mxu0
    %1148 = vdwg.mxu0
    %v1150 = vsel %vm958, %v1001, 0
    %1152 = vmatprep.subr.mxu0 0.0
    %1153 = vmatpush1.msra.mxu0 %v133
    %1154 = vmatprep.subr.mxu0 0.0
    %1155 = vmatpush1.msra.mxu0 0.0
    %1156 = vmatprep.subr.mxu0 0.0
    %1157 = vmatpush1.msra.mxu0 0.0
    %1158 = vmatprep.subr.mxu0 0.0
    %1159 = vmatpush1.msra.mxu0 0.0
    %1160 = vmatprep.subr.mxu0 0.0
    %1161 = vmatpush1.msra.mxu0 0.0
    %1162 = vmatprep.subr.mxu0 0.0
    %1163 = vmatpush1.msra.mxu0 0.0
    %1164 = vmatprep.subr.mxu0 0.0
    %1165 = vmatpush1.msra.mxu0 0.0
    %1166 = vmatprep.subr.mxu0 0.0
    %1167 = vmatpush1.msra.mxu0 0.0
    %1168 = vmatprep.subr.mxu0 0.0
    %1169 = vmatpush1.msra.mxu0 0.0
    %1170 = vmatprep.subr.mxu0 0.0
    %1171 = vmatpush1.msra.mxu0 0.0
    %1172 = vmatprep.subr.mxu0 0.0
    %1173 = vmatpush1.msra.mxu0 0.0
    %1174 = vmatprep.subr.mxu0 0.0
    %1175 = vmatpush1.msra.mxu0 0.0
    %1176 = vmatprep.subr.mxu0 0.0
    %1177 = vmatpush1.msra.mxu0 0.0
    %1178 = vmatprep.subr.mxu0 0.0
    %1179 = vmatpush1.msra.mxu0 0.0
    %1180 = vmatprep.subr.mxu0 0.0
    %1181 = vmatpush1.msra.mxu0 0.0
    %1182 = vmatprep.subr.mxu0 0.0
    %1183 = vmatpush1.msra.mxu0 0.0
    %1184 = vmatprep.subr.mxu0 0.0
    %1185 = vmatpush1.msra.mxu0 0.0
    %1186 = vmatprep.subr.mxu0 0.0
    %1187 = vmatpush1.msra.mxu0 0.0
    %1188 = vmatprep.subr.mxu0 0.0
    %1189 = vmatpush1.msra.mxu0 0.0
    %1190 = vmatprep.subr.mxu0 0.0
    %1191 = vmatpush1.msra.mxu0 0.0
    %1192 = vmatprep.subr.mxu0 0.0
    %1193 = vmatpush1.msra.mxu0 0.0
    %1194 = vmatprep.subr.mxu0 0.0
    %1195 = vmatpush1.msra.mxu0 0.0
    %1196 = vmatprep.subr.mxu0 0.0
    %1197 = vmatpush1.msra.mxu0 0.0
    %1198 = vmatprep.subr.mxu0 0.0
    %1199 = vmatpush1.msra.mxu0 0.0
    %1200 = vmatprep.subr.mxu0 0.0
    %1201 = vmatpush1.msra.mxu0 0.0
    %1202 = vmatprep.subr.mxu0 0.0
    %1203 = vmatpush1.msra.mxu0 0.0
    %1204 = vmatprep.subr.mxu0 0.0
    %1205 = vmatpush1.msra.mxu0 0.0
    %1206 = vmatprep.subr.mxu0 0.0
    %1207 = vmatpush1.msra.mxu0 0.0
    %1208 = vmatprep.subr.mxu0 0.0
    %1209 = vmatpush1.msra.mxu0 0.0
    %1210 = vmatprep.subr.mxu0 0.0
    %1211 = vmatpush1.msra.mxu0 0.0
    %1212 = vmatprep.subr.mxu0 0.0
    %1213 = vmatpush1.msra.mxu0 0.0
    %1214 = vmatprep.subr.mxu0 0.0
    %1215 = vmatpush1.msra.mxu0 0.0
    %1216 = vmatprep.mubr.f32.mxu0 0.0
    %1217 = vmatmul.mubr.f32.gmra.mrb[0].mxu0 %v1150
    %v1218 = vpop.f32.mrb[0].mxu0
    %v1219 = vadd.f32 0.0, %v1218
    %v1220 = vpop.f32.mrb[0].mxu0
    %1221 = vdwg.mxu0
    %v1223 = vsel %vm958, %v1002, 0
    %1225 = vmatprep.subr.mxu0 0.0
    %1226 = vmatpush1.msra.mxu0 %v134
    %1227 = vmatprep.subr.mxu0 0.0
    %1228 = vmatpush1.msra.mxu0 0.0
    %1229 = vmatprep.subr.mxu0 0.0
    %1230 = vmatpush1.msra.mxu0 0.0
    %1231 = vmatprep.subr.mxu0 0.0
    %1232 = vmatpush1.msra.mxu0 0.0
    %1233 = vmatprep.subr.mxu0 0.0
    %1234 = vmatpush1.msra.mxu0 0.0
    %1235 = vmatprep.subr.mxu0 0.0
    %1236 = vmatpush1.msra.mxu0 0.0
    %1237 = vmatprep.subr.mxu0 0.0
    %1238 = vmatpush1.msra.mxu0 0.0
    %1239 = vmatprep.subr.mxu0 0.0
    %1240 = vmatpush1.msra.mxu0 0.0
    %1241 = vmatprep.subr.mxu0 0.0
    %1242 = vmatpush1.msra.mxu0 0.0
    %1243 = vmatprep.subr.mxu0 0.0
    %1244 = vmatpush1.msra.mxu0 0.0
    %1245 = vmatprep.subr.mxu0 0.0
    %1246 = vmatpush1.msra.mxu0 0.0
    %1247 = vmatprep.subr.mxu0 0.0
    %1248 = vmatpush1.msra.mxu0 0.0
    %1249 = vmatprep.subr.mxu0 0.0
    %1250 = vmatpush1.msra.mxu0 0.0
    %1251 = vmatprep.subr.mxu0 0.0
    %1252 = vmatpush1.msra.mxu0 0.0
    %1253 = vmatprep.subr.mxu0 0.0
    %1254 = vmatpush1.msra.mxu0 0.0
    %1255 = vmatprep.subr.mxu0 0.0
    %1256 = vmatpush1.msra.mxu0 0.0
    %1257 = vmatprep.subr.mxu0 0.0
    %1258 = vmatpush1.msra.mxu0 0.0
    %1259 = vmatprep.subr.mxu0 0.0
    %1260 = vmatpush1.msra.mxu0 0.0
    %1261 = vmatprep.subr.mxu0 0.0
    %1262 = vmatpush1.msra.mxu0 0.0
    %1263 = vmatprep.subr.mxu0 0.0
    %1264 = vmatpush1.msra.mxu0 0.0
    %1265 = vmatprep.subr.mxu0 0.0
    %1266 = vmatpush1.msra.mxu0 0.0
    %1267 = vmatprep.subr.mxu0 0.0
    %1268 = vmatpush1.msra.mxu0 0.0
    %1269 = vmatprep.subr.mxu0 0.0
    %1270 = vmatpush1.msra.mxu0 0.0
    %1271 = vmatprep.subr.mxu0 0.0
    %1272 = vmatpush1.msra.mxu0 0.0
    %1273 = vmatprep.subr.mxu0 0.0
    %1274 = vmatpush1.msra.mxu0 0.0
    %1275 = vmatprep.subr.mxu0 0.0
    %1276 = vmatpush1.msra.mxu0 0.0
    %1277 = vmatprep.subr.mxu0 0.0
    %1278 = vmatpush1.msra.mxu0 0.0
    %1279 = vmatprep.subr.mxu0 0.0
    %1280 = vmatpush1.msra.mxu0 0.0
    %1281 = vmatprep.subr.mxu0 0.0
    %1282 = vmatpush1.msra.mxu0 0.0
    %1283 = vmatprep.subr.mxu0 0.0
    %1284 = vmatpush1.msra.mxu0 0.0
    %1285 = vmatprep.subr.mxu0 0.0
    %1286 = vmatpush1.msra.mxu0 0.0
    %1287 = vmatprep.subr.mxu0 0.0
    %1288 = vmatpush1.msra.mxu0 0.0
    %1289 = vmatprep.mubr.f32.mxu0 0.0
    %1290 = vmatmul.mubr.f32.gmra.mrb[0].mxu0 %v1223
    %v1291 = vpop.f32.mrb[0].mxu0
    %v1292 = vadd.f32 0.0, %v1291
    %v1293 = vpop.f32.mrb[0].mxu0
    %1294 = vdwg.mxu0
    %v1295 = vsel %vm958, %v745, -inf
    %1296 = vmax.xlane.f32.xlu0 %v1295
    %v1297 = vpop.xlane.xlu0 %1296
    %v1298 = vsel %vm958, %v815, -inf
    %1299 = vmax.xlane.f32.xlu0 %v1298
    %v1300 = vpop.xlane.xlu0 %1299
    %v1301 = vsel %vm958, %v885, -inf
    %1302 = vmax.xlane.f32.xlu0 %v1301
    %v1303 = vpop.xlane.xlu0 %1302
    %v1304 = vsel %vm958, %v955, -inf
    %1305 = vmax.xlane.f32.xlu0 %v1304
    %v1306 = vpop.xlane.xlu0 %1305
    %v1307 = vsub.f32 %v745, %v1297
    %v1308 = vsub.f32 %v815, %v1300
    %v1309 = vsub.f32 %v885, %v1303
    %v1310 = vsub.f32 %v955, %v1306
    %v1311 = vmul.f32 %v1307, 1.442695
    %v1312 = vpow.pop %v1311
    %v1313 = vmul.f32 %v1308, 1.442695
    %v1314 = vpow.pop %v1313
    %v1315 = vmul.f32 %v1309, 1.442695
    %v1316 = vpow.pop %v1315
    %v1317 = vmul.f32 %v1310, 1.442695
    %v1318 = vpow.pop %v1317
    %v1319 = vsel %vm958, %v1312, 0.0
    %1320 = vadd.xlane.f32.xlu0 %v1319
    %v1321 = vpop.xlane.xlu0 %1320
    %v1322 = vsel %vm958, %v1314, 0.0
    %1323 = vadd.xlane.f32.xlu0 %v1322
    %v1324 = vpop.xlane.xlu0 %1323
    %v1325 = vsel %vm958, %v1316, 0.0
    %1326 = vadd.xlane.f32.xlu0 %v1325
    %v1327 = vpop.xlane.xlu0 %1326
    %v1328 = vsel %vm958, %v1318, 0.0
    %1329 = vadd.xlane.f32.xlu0 %v1328
    %v1330 = vpop.xlane.xlu0 %1329
    %v1331 = vrcp.pop %v1321
    %v1332 = vrcp.pop %v1324
    %v1333 = vrcp.pop %v1327
    %v1334 = vrcp.pop %v1330
    %v1335 = vmul.f32 %v1312, %v1331
    %v1336 = vmul.f32 %v1314, %v1332
    %v1337 = vmul.f32 %v1316, %v1333
    %v1338 = vmul.f32 %v1318, %v1334
    %v1340 = vsel %vm958, %v1335, 0
    %1342 = vmatprep.subr.mxu0 0.0
    %1343 = vmatpush1.msra.mxu0 %v127
    %1344 = vmatprep.subr.mxu0 0.0
    %1345 = vmatpush1.msra.mxu0 0.0
    %1346 = vmatprep.subr.mxu0 0.0
    %1347 = vmatpush1.msra.mxu0 0.0
    %1348 = vmatprep.subr.mxu0 0.0
    %1349 = vmatpush1.msra.mxu0 0.0
    %1350 = vmatprep.subr.mxu0 0.0
    %1351 = vmatpush1.msra.mxu0 0.0
    %1352 = vmatprep.subr.mxu0 0.0
    %1353 = vmatpush1.msra.mxu0 0.0
    %1354 = vmatprep.subr.mxu0 0.0
    %1355 = vmatpush1.msra.mxu0 0.0
    %1356 = vmatprep.subr.mxu0 0.0
    %1357 = vmatpush1.msra.mxu0 0.0
    %1358 = vmatprep.subr.mxu0 0.0
    %1359 = vmatpush1.msra.mxu0 0.0
    %1360 = vmatprep.subr.mxu0 0.0
    %1361 = vmatpush1.msra.mxu0 0.0
    %1362 = vmatprep.subr.mxu0 0.0
    %1363 = vmatpush1.msra.mxu0 0.0
    %1364 = vmatprep.subr.mxu0 0.0
    %1365 = vmatpush1.msra.mxu0 0.0
    %1366 = vmatprep.subr.mxu0 0.0
    %1367 = vmatpush1.msra.mxu0 0.0
    %1368 = vmatprep.subr.mxu0 0.0
    %1369 = vmatpush1.msra.mxu0 0.0
    %1370 = vmatprep.subr.mxu0 0.0
    %1371 = vmatpush1.msra.mxu0 0.0
    %1372 = vmatprep.subr.mxu0 0.0
    %1373 = vmatpush1.msra.mxu0 0.0
    %1374 = vmatprep.subr.mxu0 0.0
    %1375 = vmatpush1.msra.mxu0 0.0
    %1376 = vmatprep.subr.mxu0 0.0
    %1377 = vmatpush1.msra.mxu0 0.0
    %1378 = vmatprep.subr.mxu0 0.0
    %1379 = vmatpush1.msra.mxu0 0.0
    %1380 = vmatprep.subr.mxu0 0.0
    %1381 = vmatpush1.msra.mxu0 0.0
    %1382 = vmatprep.subr.mxu0 0.0
    %1383 = vmatpush1.msra.mxu0 0.0
    %1384 = vmatprep.subr.mxu0 0.0
    %1385 = vmatpush1.msra.mxu0 0.0
    %1386 = vmatprep.subr.mxu0 0.0
    %1387 = vmatpush1.msra.mxu0 0.0
    %1388 = vmatprep.subr.mxu0 0.0
    %1389 = vmatpush1.msra.mxu0 0.0
    %1390 = vmatprep.subr.mxu0 0.0
    %1391 = vmatpush1.msra.mxu0 0.0
    %1392 = vmatprep.subr.mxu0 0.0
    %1393 = vmatpush1.msra.mxu0 0.0
    %1394 = vmatprep.subr.mxu0 0.0
    %1395 = vmatpush1.msra.mxu0 0.0
    %1396 = vmatprep.subr.mxu0 0.0
    %1397 = vmatpush1.msra.mxu0 0.0
    %1398 = vmatprep.subr.mxu0 0.0
    %1399 = vmatpush1.msra.mxu0 0.0
    %1400 = vmatprep.subr.mxu0 0.0
    %1401 = vmatpush1.msra.mxu0 0.0
    %1402 = vmatprep.subr.mxu0 0.0
    %1403 = vmatpush1.msra.mxu0 0.0
    %1404 = vmatprep.subr.mxu0 0.0
    %1405 = vmatpush1.msra.mxu0 0.0
    %1406 = vmatprep.mubr.f32.mxu0 0.0
    %1407 = vmatmul.mubr.f32.gmra.mrb[0].mxu0 %v1340
    %v1408 = vpop.f32.mrb[0].mxu0
    %v1409 = vadd.f32 0.0, %v1408
    %v1410 = vpop.f32.mrb[0].mxu0
    %1411 = vdwg.mxu0
    %v1413 = vsel %vm958, %v1336, 0
    %1415 = vmatprep.subr.mxu0 0.0
    %1416 = vmatpush1.msra.mxu0 %v128
    %1417 = vmatprep.subr.mxu0 0.0
    %1418 = vmatpush1.msra.mxu0 0.0
    %1419 = vmatprep.subr.mxu0 0.0
    %1420 = vmatpush1.msra.mxu0 0.0
    %1421 = vmatprep.subr.mxu0 0.0
    %1422 = vmatpush1.msra.mxu0 0.0
    %1423 = vmatprep.subr.mxu0 0.0
    %1424 = vmatpush1.msra.mxu0 0.0
    %1425 = vmatprep.subr.mxu0 0.0
    %1426 = vmatpush1.msra.mxu0 0.0
    %1427 = vmatprep.subr.mxu0 0.0
    %1428 = vmatpush1.msra.mxu0 0.0
    %1429 = vmatprep.subr.mxu0 0.0
    %1430 = vmatpush1.msra.mxu0 0.0
    %1431 = vmatprep.subr.mxu0 0.0
    %1432 = vmatpush1.msra.mxu0 0.0
    %1433 = vmatprep.subr.mxu0 0.0
    %1434 = vmatpush1.msra.mxu0 0.0
    %1435 = vmatprep.subr.mxu0 0.0
    %1436 = vmatpush1.msra.mxu0 0.0
    %1437 = vmatprep.subr.mxu0 0.0
    %1438 = vmatpush1.msra.mxu0 0.0
    %1439 = vmatprep.subr.mxu0 0.0
    %1440 = vmatpush1.msra.mxu0 0.0
    %1441 = vmatprep.subr.mxu0 0.0
    %1442 = vmatpush1.msra.mxu0 0.0
    %1443 = vmatprep.subr.mxu0 0.0
    %1444 = vmatpush1.msra.mxu0 0.0
    %1445 = vmatprep.subr.mxu0 0.0
    %1446 = vmatpush1.msra.mxu0 0.0
    %1447 = vmatprep.subr.mxu0 0.0
    %1448 = vmatpush1.msra.mxu0 0.0
    %1449 = vmatprep.subr.mxu0 0.0
    %1450 = vmatpush1.msra.mxu0 0.0
    %1451 = vmatprep.subr.mxu0 0.0
    %1452 = vmatpush1.msra.mxu0 0.0
    %1453 = vmatprep.subr.mxu0 0.0
    %1454 = vmatpush1.msra.mxu0 0.0
    %1455 = vmatprep.subr.mxu0 0.0
    %1456 = vmatpush1.msra.mxu0 0.0
    %1457 = vmatprep.subr.mxu0 0.0
    %1458 = vmatpush1.msra.mxu0 0.0
    %1459 = vmatprep.subr.mxu0 0.0
    %1460 = vmatpush1.msra.mxu0 0.0
    %1461 = vmatprep.subr.mxu0 0.0
    %1462 = vmatpush1.msra.mxu0 0.0
    %1463 = vmatprep.subr.mxu0 0.0
    %1464 = vmatpush1.msra.mxu0 0.0
    %1465 = vmatprep.subr.mxu0 0.0
    %1466 = vmatpush1.msra.mxu0 0.0
    %1467 = vmatprep.subr.mxu0 0.0
    %1468 = vmatpush1.msra.mxu0 0.0
    %1469 = vmatprep.subr.mxu0 0.0
    %1470 = vmatpush1.msra.mxu0 0.0
    %1471 = vmatprep.subr.mxu0 0.0
    %1472 = vmatpush1.msra.mxu0 0.0
    %1473 = vmatprep.subr.mxu0 0.0
    %1474 = vmatpush1.msra.mxu0 0.0
    %1475 = vmatprep.subr.mxu0 0.0
    %1476 = vmatpush1.msra.mxu0 0.0
    %1477 = vmatprep.subr.mxu0 0.0
    %1478 = vmatpush1.msra.mxu0 0.0
    %1479 = vmatprep.mubr.f32.mxu0 0.0
    %1480 = vmatmul.mubr.f32.gmra.mrb[0].mxu0 %v1413
    %v1481 = vpop.f32.mrb[0].mxu0
    %v1482 = vadd.f32 0.0, %v1481
    %v1483 = vpop.f32.mrb[0].mxu0
    %1484 = vdwg.mxu0
    %v1486 = vsel %vm958, %v1337, 0
    %1488 = vmatprep.subr.mxu0 0.0
    %1489 = vmatpush1.msra.mxu0 %v129
    %1490 = vmatprep.subr.mxu0 0.0
    %1491 = vmatpush1.msra.mxu0 0.0
    %1492 = vmatprep.subr.mxu0 0.0
    %1493 = vmatpush1.msra.mxu0 0.0
    %1494 = vmatprep.subr.mxu0 0.0
    %1495 = vmatpush1.msra.mxu0 0.0
    %1496 = vmatprep.subr.mxu0 0.0
    %1497 = vmatpush1.msra.mxu0 0.0
    %1498 = vmatprep.subr.mxu0 0.0
    %1499 = vmatpush1.msra.mxu0 0.0
    %1500 = vmatprep.subr.mxu0 0.0
    %1501 = vmatpush1.msra.mxu0 0.0
    %1502 = vmatprep.subr.mxu0 0.0
    %1503 = vmatpush1.msra.mxu0 0.0
    %1504 = vmatprep.subr.mxu0 0.0
    %1505 = vmatpush1.msra.mxu0 0.0
    %1506 = vmatprep.subr.mxu0 0.0
    %1507 = vmatpush1.msra.mxu0 0.0
    %1508 = vmatprep.subr.mxu0 0.0
    %1509 = vmatpush1.msra.mxu0 0.0
    %1510 = vmatprep.subr.mxu0 0.0
    %1511 = vmatpush1.msra.mxu0 0.0
    %1512 = vmatprep.subr.mxu0 0.0
    %1513 = vmatpush1.msra.mxu0 0.0
    %1514 = vmatprep.subr.mxu0 0.0
    %1515 = vmatpush1.msra.mxu0 0.0
    %1516 = vmatprep.subr.mxu0 0.0
    %1517 = vmatpush1.msra.mxu0 0.0
    %1518 = vmatprep.subr.mxu0 0.0
    %1519 = vmatpush1.msra.mxu0 0.0
    %1520 = vmatprep.subr.mxu0 0.0
    %1521 = vmatpush1.msra.mxu0 0.0
    %1522 = vmatprep.subr.mxu0 0.0
    %1523 = vmatpush1.msra.mxu0 0.0
    %1524 = vmatprep.subr.mxu0 0.0
    %1525 = vmatpush1.msra.mxu0 0.0
    %1526 = vmatprep.subr.mxu0 0.0
    %1527 = vmatpush1.msra.mxu0 0.0
    %1528 = vmatprep.subr.mxu0 0.0
    %1529 = vmatpush1.msra.mxu0 0.0
    %1530 = vmatprep.subr.mxu0 0.0
    %1531 = vmatpush1.msra.mxu0 0.0
    %1532 = vmatprep.subr.mxu0 0.0
    %1533 = vmatpush1.msra.mxu0 0.0
    %1534 = vmatprep.subr.mxu0 0.0
    %1535 = vmatpush1.msra.mxu0 0.0
    %1536 = vmatprep.subr.mxu0 0.0
    %1537 = vmatpush1.msra.mxu0 0.0
    %1538 = vmatprep.subr.mxu0 0.0
    %1539 = vmatpush1.msra.mxu0 0.0
    %1540 = vmatprep.subr.mxu0 0.0
    %1541 = vmatpush1.msra.mxu0 0.0
    %1542 = vmatprep.subr.mxu0 0.0
    %1543 = vmatpush1.msra.mxu0 0.0
    %1544 = vmatprep.subr.mxu0 0.0
    %1545 = vmatpush1.msra.mxu0 0.0
    %1546 = vmatprep.subr.mxu0 0.0
    %1547 = vmatpush1.msra.mxu0 0.0
    %1548 = vmatprep.subr.mxu0 0.0
    %1549 = vmatpush1.msra.mxu0 0.0
    %1550 = vmatprep.subr.mxu0 0.0
    %1551 = vmatpush1.msra.mxu0 0.0
    %1552 = vmatprep.mubr.f32.mxu0 0.0
    %1553 = vmatmul.mubr.f32.gmra.mrb[0].mxu0 %v1486
    %v1554 = vpop.f32.mrb[0].mxu0
    %v1555 = vadd.f32 0.0, %v1554
    %v1556 = vpop.f32.mrb[0].mxu0
    %1557 = vdwg.mxu0
    %v1559 = vsel %vm958, %v1338, 0
    %1561 = vmatprep.subr.mxu0 0.0
    %1562 = vmatpush1.msra.mxu0 %v130
    %1563 = vmatprep.subr.mxu0 0.0
    %1564 = vmatpush1.msra.mxu0 0.0
    %1565 = vmatprep.subr.mxu0 0.0
    %1566 = vmatpush1.msra.mxu0 0.0
    %1567 = vmatprep.subr.mxu0 0.0
    %1568 = vmatpush1.msra.mxu0 0.0
    %1569 = vmatprep.subr.mxu0 0.0
    %1570 = vmatpush1.msra.mxu0 0.0
    %1571 = vmatprep.subr.mxu0 0.0
    %1572 = vmatpush1.msra.mxu0 0.0
    %1573 = vmatprep.subr.mxu0 0.0
    %1574 = vmatpush1.msra.mxu0 0.0
    %1575 = vmatprep.subr.mxu0 0.0
    %1576 = vmatpush1.msra.mxu0 0.0
    %1577 = vmatprep.subr.mxu0 0.0
    %1578 = vmatpush1.msra.mxu0 0.0
    %1579 = vmatprep.subr.mxu0 0.0
    %1580 = vmatpush1.msra.mxu0 0.0
    %1581 = vmatprep.subr.mxu0 0.0
    %1582 = vmatpush1.msra.mxu0 0.0
    %1583 = vmatprep.subr.mxu0 0.0
    %1584 = vmatpush1.msra.mxu0 0.0
    %1585 = vmatprep.subr.mxu0 0.0
    %1586 = vmatpush1.msra.mxu0 0.0
    %1587 = vmatprep.subr.mxu0 0.0
    %1588 = vmatpush1.msra.mxu0 0.0
    %1589 = vmatprep.subr.mxu0 0.0
    %1590 = vmatpush1.msra.mxu0 0.0
    %1591 = vmatprep.subr.mxu0 0.0
    %1592 = vmatpush1.msra.mxu0 0.0
    %1593 = vmatprep.subr.mxu0 0.0
    %1594 = vmatpush1.msra.mxu0 0.0
    %1595 = vmatprep.subr.mxu0 0.0
    %1596 = vmatpush1.msra.mxu0 0.0
    %1597 = vmatprep.subr.mxu0 0.0
    %1598 = vmatpush1.msra.mxu0 0.0
    %1599 = vmatprep.subr.mxu0 0.0
    %1600 = vmatpush1.msra.mxu0 0.0
    %1601 = vmatprep.subr.mxu0 0.0
    %1602 = vmatpush1.msra.mxu0 0.0
    %1603 = vmatprep.subr.mxu0 0.0
    %1604 = vmatpush1.msra.mxu0 0.0
    %1605 = vmatprep.subr.mxu0 0.0
    %1606 = vmatpush1.msra.mxu0 0.0
    %1607 = vmatprep.subr.mxu0 0.0
    %1608 = vmatpush1.msra.mxu0 0.0
    %1609 = vmatprep.subr.mxu0 0.0
    %1610 = vmatpush1.msra.mxu0 0.0
    %1611 = vmatprep.subr.mxu0 0.0
    %1612 = vmatpush1.msra.mxu0 0.0
    %1613 = vmatprep.subr.mxu0 0.0
    %1614 = vmatpush1.msra.mxu0 0.0
    %1615 = vmatprep.subr.mxu0 0.0
    %1616 = vmatpush1.msra.mxu0 0.0
    %1617 = vmatprep.subr.mxu0 0.0
    %1618 = vmatpush1.msra.mxu0 0.0
    %1619 = vmatprep.subr.mxu0 0.0
    %1620 = vmatpush1.msra.mxu0 0.0
    %1621 = vmatprep.subr.mxu0 0.0
    %1622 = vmatpush1.msra.mxu0 0.0
    %1623 = vmatprep.subr.mxu0 0.0
    %1624 = vmatpush1.msra.mxu0 0.0
    %1625 = vmatprep.mubr.f32.mxu0 0.0
    %1626 = vmatmul.mubr.f32.gmra.mrb[0].mxu0 %v1559
    %v1627 = vpop.f32.mrb[0].mxu0
    %v1628 = vadd.f32 0.0, %v1627
    %v1629 = vpop.f32.mrb[0].mxu0
    %1630 = vdwg.mxu0
    %1631 = vst.msk [vmem:[#allocation13] sm:$0xff] %vm141, %v1073
    %1632 = vst.msk [vmem:[#allocation13 + $0x8] sm:$0xff] %vm141, %v1146
    %1633 = vst.msk [vmem:[#allocation13 + $0x10] sm:$0xff] %vm141, %v1219
    %1634 = vst.msk [vmem:[#allocation13 + $0x18] sm:$0xff] %vm141, %v1292
    %1635 = vst.msk [vmem:[#allocation14] sm:$0xff] %vm141, %v1409
    %1636 = vst.msk [vmem:[#allocation14 + $0x8] sm:$0xff] %vm141, %v1482
    %1637 = vst.msk [vmem:[#allocation14 + $0x10] sm:$0xff] %vm141, %v1555
    %1638 = vst.msk [vmem:[#allocation14 + $0x18] sm:$0xff] %vm141, %v1628
    // Predicated region
    $region50: #{tpu_custom_call.1} parent=1 // pred_check
      _
    $region51: #{tpu_custom_call.1} parent=1 // pred_check_branch
      %1640 = sbr.rel (0) target = $region53
    $region52: #{tpu_custom_call.1} parent=1 // pred_region
      %s1642 = ssub.s32 512, 512
      %1643 = vsyncadd [#allocation4], %s1642
      %s1644 = sshll.u32 [#allocation13], 4
      %s1645 = int_to_ptr.vmem [resolvable:$true] %s1644
      %1650 = dma.vmem_to_hbm [thread:$0]  %s1645, 512, %s6, [#allocation4], 128, 128, 8
    $region53: #{tpu_custom_call.1} parent=1 // pred_fallthru
      _
    // Predicated region
    $region54: #{tpu_custom_call.1} parent=1 // pred_check
      _
    $region55: #{tpu_custom_call.1} parent=1 // pred_check_branch
      %1652 = sbr.rel (0) target = $region57
    $region56: #{tpu_custom_call.1} parent=1 // pred_region
      %s1654 = ssub.s32 512, 512
      %1655 = vsyncadd [#allocation15], %s1654
      %s1656 = sshll.u32 [#allocation14], 4
      %s1657 = int_to_ptr.vmem [resolvable:$true] %s1656
      %1662 = dma.vmem_to_hbm [thread:$0]  %s1657, 512, %s7, [#allocation15], 128, 128, 8
    $region57: #{tpu_custom_call.1} parent=1 // pred_fallthru
      _
    // Predicated region
    $region58: #{tpu_custom_call.1} parent=1 // pred_check
      _
    $region59: #{tpu_custom_call.1} parent=1 // pred_check_branch
      %1664 = sbr.rel (0) target = $region61
    $region60: #{tpu_custom_call.1} parent=1 // pred_region
      %1665 = dma.done [#allocation4], 512
    $region61: #{tpu_custom_call.1} parent=1 // pred_fallthru
      _
    // Predicated region
    $region62: #{tpu_custom_call.1} parent=1 // pred_check
      _
    $region63: #{tpu_custom_call.1} parent=1 // pred_check_branch
      %1667 = sbr.rel (0) target = $region65
    $region64: #{tpu_custom_call.1} parent=1 // pred_region
      %1668 = dma.done [#allocation15], 512
    $region65: #{tpu_custom_call.1} parent=1 // pred_fallthru
      _
    %1669 = vsyncpa [#allocation3], 1
    %1670 = vsyncpa [#allocation6], 1
    %1671 = vsyncpa [#allocation9], 1
    %1672 = vsyncpa [#allocation12], 1
    %1673 = vsyncpa [#allocation4], 1
    %1674 = vsyncpa [#allocation15], 1

</llo_original>
